<compile_context>
chip_gen: v7x
topology: tpu7x:2x2x1
jax: 0.10.0
libtpu: 0.0.40
codegen_flags: <defaults>
</compile_context>

<pallas_src>
import functools

import jax
import jax.numpy as jnp
import numpy as np
from jax.experimental import pallas as pl
from jax.experimental.pallas import tpu as pltpu

KERNEL_SIZE = (11, 11)
SIGMA = (1.5, 1.5)
K1, K2 = 0.01, 0.03
DATA_RANGE = 1.0
C1 = (K1 * DATA_RANGE) ** 2
C2 = (K2 * DATA_RANGE) ** 2


def _round_up(x, m):
    return (x + m - 1) // m * m


def _gaussian_np(ksize, sigma):
    half = (ksize - 1) * 0.5
    x = np.linspace(-half, half, ksize)
    g = np.exp(-0.5 * (x / sigma) ** 2)
    return (g / g.sum()).astype(np.float32)


def _ssim_kernel(yp_ref, yt_ref, aw_ref, out_ref, x_ref, *, C, H, W, gh):
    """One grid step = one batch element, all C channels.

    yp_ref/yt_ref: (1, C, Hpad, Wpad) reflect-padded (then zero-padded) images.
    aw_ref:        (Wpad, Wout) banded column-convolution operator (zero rows /
                   cols beyond the valid region).
    out_ref:       (B,) SMEM, per-batch loss 1 - mean(ssim).
    x_ref:         (5*C, Hpad, Wpad) VMEM scratch for the fused product stack.
    """
    b = pl.program_id(0)

    p = yp_ref[0]                        # (C, Hpad, Wpad) f32
    t = yt_ref[0]

    # Fused stack [p, t, p*p, t*t, p*t] along the (tile-aligned) leading axis.
    x_ref[0 * C:1 * C] = p
    x_ref[1 * C:2 * C] = t
    x_ref[2 * C:3 * C] = p * p
    x_ref[3 * C:4 * C] = t * t
    x_ref[4 * C:5 * C] = p * t

    # 11-tap Gaussian row (H) convolution: shifted FMAs on the VPU, applied
    # once to the whole fused stack.
    acc = gh[0] * x_ref[:, 0:H, :]
    for k in range(1, len(gh)):
        acc = acc + gh[k] * x_ref[:, k:k + H, :]
    # acc: (5*C, H, Wpad)

    # 11-tap Gaussian column (W) convolution: ONE fused MXU matmul.
    y2d = acc.reshape(5 * C * H, acc.shape[-1])
    mu = jnp.dot(y2d, aw_ref[...], preferred_element_type=jnp.float32)
    # mu: (5*C*H, Wout)

    CH = C * H
    mu_p = mu[0 * CH:1 * CH]
    mu_t = mu[1 * CH:2 * CH]
    mu_pp = mu[2 * CH:3 * CH]
    mu_tt = mu[3 * CH:4 * CH]
    mu_pt = mu[4 * CH:5 * CH]

    mu_p_sq = mu_p * mu_p
    mu_t_sq = mu_t * mu_t
    mu_p_t = mu_p * mu_t
    sig_p = mu_pp - mu_p_sq
    sig_t = mu_tt - mu_t_sq
    sig_pt = mu_pt - mu_p_t

    a1 = 2.0 * mu_p_t + C1
    a2 = 2.0 * sig_pt + C2
    b1 = mu_p_sq + mu_t_sq + C1
    b2 = sig_p + sig_t + C2
    ssim = (a1 * a2) / (b1 * b2)         # (C*H, Wout)

    # Mask the zero-padded lanes (columns >= W) out of the reduction.
    col = jax.lax.broadcasted_iota(jnp.int32, ssim.shape, 1)
    ssim = jnp.where(col < W, ssim, 0.0)

    out_ref[b] = 1.0 - jnp.sum(ssim) / (C * H * W)


def ssim_loss(y, y_pred):
    assert y.shape == y_pred.shape and y.ndim == 4
    B, C, H, W = y.shape
    kh, kw = KERNEL_SIZE
    ph, pw = (kh - 1) // 2, (kw - 1) // 2
    Hp, Wp = H + 2 * ph, W + 2 * pw
    Hpad = _round_up(Hp, 8)          # sublane-aligned padded height
    Wpad = _round_up(Wp, 128)        # lane-aligned padded width (conv input)
    Wout = _round_up(W, 128)         # lane-aligned conv output width

    # Reflect pad (exactly like F.pad(..., mode='reflect')) then zero-extend to
    # the aligned shape; the zero rows/cols never contribute (see aw below).
    pad = ((0, 0), (0, 0), (ph, ph), (pw, pw))
    yp = jnp.pad(y_pred.astype(jnp.float32), pad, mode="reflect")
    yt = jnp.pad(y.astype(jnp.float32), pad, mode="reflect")
    tail = ((0, 0), (0, 0), (0, Hpad - Hp), (0, Wpad - Wp))
    yp = jnp.pad(yp, tail)
    yt = jnp.pad(yt, tail)

    # Row taps (compile-time constants) and banded column operator aw.
    gh = tuple(float(v) for v in _gaussian_np(kh, SIGMA[0]))
    gw = _gaussian_np(kw, SIGMA[1])
    aw_np = np.zeros((Wpad, Wout), np.float32)
    jcols = np.arange(W)
    for v in range(kw):
        aw_np[jcols + v, jcols] = gw[v]      # out[:, j] = sum_v gw[v]*in[:, j+v]
    aw = jnp.asarray(aw_np)

    kernel = functools.partial(_ssim_kernel, C=C, H=H, W=W, gh=gh)

    return pl.pallas_call(
        kernel,
        out_shape=jax.ShapeDtypeStruct((B,), jnp.float32),
        grid_spec=pltpu.PrefetchScalarGridSpec(
            num_scalar_prefetch=0,
            grid=(B,),
            in_specs=[
                pl.BlockSpec((1, C, Hpad, Wpad), lambda b: (b, 0, 0, 0)),
                pl.BlockSpec((1, C, Hpad, Wpad), lambda b: (b, 0, 0, 0)),
                pl.BlockSpec((Wpad, Wout), lambda b: (0, 0)),
            ],
            out_specs=pl.BlockSpec(memory_space=pltpu.MemorySpace.SMEM),
            scratch_shapes=[pltpu.VMEM((5 * C, Hpad, Wpad), jnp.float32)],
        ),
        compiler_params=pltpu.CompilerParams(
            dimension_semantics=("arbitrary",),
            vmem_limit_bytes=64 * 1024 * 1024,
        ),
    )(yp, yt, aw)


def ssim_loss_ref(y, y_pred):
    # pure-JAX reference (plain depthwise conv) for correctness checking
    B, C, H, W = y.shape
    kh, kw = KERNEL_SIZE
    ph, pw = (kh - 1) // 2, (kw - 1) // 2
    gh = _gaussian_np(kh, SIGMA[0])
    gw = _gaussian_np(kw, SIGMA[1])
    kern = jnp.asarray(np.tile(np.outer(gh, gw)[None, None], (C, 1, 1, 1)))
    pad = ((0, 0), (0, 0), (ph, ph), (pw, pw))
    yp = jnp.pad(y_pred.astype(jnp.float32), pad, mode="reflect")
    yt = jnp.pad(y.astype(jnp.float32), pad, mode="reflect")

    def dwconv(x):
        return jax.lax.conv_general_dilated(
            x, kern, window_strides=(1, 1), padding="VALID",
            dimension_numbers=("NCHW", "OIHW", "NCHW"),
            feature_group_count=C)

    mu_p, mu_t = dwconv(yp), dwconv(yt)
    mu_pp, mu_tt, mu_pt = dwconv(yp * yp), dwconv(yt * yt), dwconv(yp * yt)
    mu_p_sq, mu_t_sq, mu_p_t = mu_p * mu_p, mu_t * mu_t, mu_p * mu_t
    sig_p, sig_t, sig_pt = mu_pp - mu_p_sq, mu_tt - mu_t_sq, mu_pt - mu_p_t
    a1 = 2 * mu_p_t + C1
    a2 = 2 * sig_pt + C2
    b1 = mu_p_sq + mu_t_sq + C1
    b2 = sig_p + sig_t + C2
    ssim = a1 * a2 / (b1 * b2)
    return 1.0 - jnp.mean(ssim, axis=(1, 2, 3))


if __name__ == "__main__":
    key = jax.random.PRNGKey(0)
    k1, k2 = jax.random.split(key)
    B, C, H, W = 2, 4, 16, 16
    y_pred = jax.random.uniform(k1, (B, C, H, W), dtype=jnp.float32)
    y = jnp.clip(y_pred * 0.75 + 0.05 * jax.random.uniform(k2, (B, C, H, W),
                                                           dtype=jnp.float32),
                 0.0, 1.0)

    out = ssim_loss(y, y_pred)
    jax.block_until_ready(out)

    ref = ssim_loss_ref(y, y_pred)
    np.testing.assert_allclose(np.asarray(out), np.asarray(ref),
                               rtol=1e-4, atol=1e-4)
    print("KERNEL_OK")
</pallas_src>

<mosaic_0001>
module attributes {stable_mosaic.version = 11 : i64} {
  func.func @_ssim_kernel(%arg0: i32, %arg1: memref<1x4x32x128xf32, #tpu.memory_space<vmem>>, %arg2: memref<1x4x32x128xf32, #tpu.memory_space<vmem>>, %arg3: memref<128x128xf32, #tpu.memory_space<vmem>>, %arg4: memref<2xf32, #tpu.memory_space<smem>>, %arg5: memref<20x32x128xf32, #tpu.memory_space<vmem>>) attributes {dimension_semantics = [#tpu.dimension_semantics<arbitrary>], iteration_bounds = array<i64: 2>, scalar_prefetch = 0 : i64, scratch_operands = 1 : i64, tpu.core_type = #tpu.core_type<tc>, window_params = [{transform_indices = @transform_0, window_bounds = array<i64: 1, 4, 32, 128>}, {transform_indices = @transform_1, window_bounds = array<i64: 1, 4, 32, 128>}, {pipeline_mode = #tpu.pipeline_mode<synchronous>, transform_indices = @transform_2, window_bounds = array<i64: 128, 128>}, {transform_indices = @transform_3, window_bounds = array<i64: 2>}]} {
    %c0 = arith.constant 0 : index
    %c0_0 = arith.constant 0 : index
    %c0_1 = arith.constant 0 : index
    %c0_2 = arith.constant 0 : index
    %0 = vector.load %arg1[%c0, %c0_0, %c0_1, %c0_2] : memref<1x4x32x128xf32, #tpu.memory_space<vmem>>, vector<1x4x32x128xf32>
    %1 = vector.shape_cast %0 : vector<1x4x32x128xf32> to vector<4x32x128xf32>
    %c0_3 = arith.constant 0 : index
    %c0_4 = arith.constant 0 : index
    %c0_5 = arith.constant 0 : index
    %c0_6 = arith.constant 0 : index
    %2 = vector.load %arg2[%c0_3, %c0_4, %c0_5, %c0_6] : memref<1x4x32x128xf32, #tpu.memory_space<vmem>>, vector<1x4x32x128xf32>
    %3 = vector.shape_cast %2 : vector<1x4x32x128xf32> to vector<4x32x128xf32>
    %c0_7 = arith.constant 0 : index
    %c0_8 = arith.constant 0 : index
    %c0_9 = arith.constant 0 : index
    %4 = vector.load %arg5[%c0_7, %c0_8, %c0_9] : memref<20x32x128xf32, #tpu.memory_space<vmem>>, vector<4x32x128xf32>
    tpu.vector_store %arg5[%c0_7, %c0_8, %c0_9], %1 {strides = array<i32>} : memref<20x32x128xf32, #tpu.memory_space<vmem>>, vector<4x32x128xf32>,
    %c4 = arith.constant 4 : index
    %c0_10 = arith.constant 0 : index
    %c0_11 = arith.constant 0 : index
    %5 = vector.load %arg5[%c4, %c0_10, %c0_11] : memref<20x32x128xf32, #tpu.memory_space<vmem>>, vector<4x32x128xf32>
    tpu.vector_store %arg5[%c4, %c0_10, %c0_11], %3 {strides = array<i32>} : memref<20x32x128xf32, #tpu.memory_space<vmem>>, vector<4x32x128xf32>,
    %6 = arith.mulf %1, %1 : vector<4x32x128xf32>
    %c8 = arith.constant 8 : index
    %c0_12 = arith.constant 0 : index
    %c0_13 = arith.constant 0 : index
    %7 = vector.load %arg5[%c8, %c0_12, %c0_13] : memref<20x32x128xf32, #tpu.memory_space<vmem>>, vector<4x32x128xf32>
    tpu.vector_store %arg5[%c8, %c0_12, %c0_13], %6 {strides = array<i32>} : memref<20x32x128xf32, #tpu.memory_space<vmem>>, vector<4x32x128xf32>,
    %8 = arith.mulf %3, %3 : vector<4x32x128xf32>
    %c12 = arith.constant 12 : index
    %c0_14 = arith.constant 0 : index
    %c0_15 = arith.constant 0 : index
    %9 = vector.load %arg5[%c12, %c0_14, %c0_15] : memref<20x32x128xf32, #tpu.memory_space<vmem>>, vector<4x32x128xf32>
    tpu.vector_store %arg5[%c12, %c0_14, %c0_15], %8 {strides = array<i32>} : memref<20x32x128xf32, #tpu.memory_space<vmem>>, vector<4x32x128xf32>,
    %10 = arith.mulf %1, %3 : vector<4x32x128xf32>
    %c16 = arith.constant 16 : index
    %c0_16 = arith.constant 0 : index
    %c0_17 = arith.constant 0 : index
    %11 = vector.load %arg5[%c16, %c0_16, %c0_17] : memref<20x32x128xf32, #tpu.memory_space<vmem>>, vector<4x32x128xf32>
    tpu.vector_store %arg5[%c16, %c0_16, %c0_17], %10 {strides = array<i32>} : memref<20x32x128xf32, #tpu.memory_space<vmem>>, vector<4x32x128xf32>,
    %c0_18 = arith.constant 0 : index
    %c0_19 = arith.constant 0 : index
    %c0_20 = arith.constant 0 : index
    %12 = vector.load %arg5[%c0_18, %c0_19, %c0_20] : memref<20x32x128xf32, #tpu.memory_space<vmem>>, vector<20x16x128xf32>
    %cst = arith.constant 0.00102838012 : f32
    %13 = vector.broadcast %cst : f32 to vector<20x16x128xf32>
    %14 = arith.mulf %13, %12 : vector<20x16x128xf32>
    %c0_21 = arith.constant 0 : index
    %c1 = arith.constant 1 : index
    %c0_22 = arith.constant 0 : index
    %15 = vector.load %arg5[%c0_21, %c1, %c0_22] : memref<20x32x128xf32, #tpu.memory_space<vmem>>, vector<20x16x128xf32>
    %cst_23 = arith.constant 0.00759875821 : f32
    %16 = vector.broadcast %cst_23 : f32 to vector<20x16x128xf32>
    %17 = arith.mulf %16, %15 : vector<20x16x128xf32>
    %18 = arith.addf %14, %17 : vector<20x16x128xf32>
    %c0_24 = arith.constant 0 : index
    %c2 = arith.constant 2 : index
    %c0_25 = arith.constant 0 : index
    %19 = vector.load %arg5[%c0_24, %c2, %c0_25] : memref<20x32x128xf32, #tpu.memory_space<vmem>>, vector<20x16x128xf32>
    %cst_26 = arith.constant 0.0360007733 : f32
    %20 = vector.broadcast %cst_26 : f32 to vector<20x16x128xf32>
    %21 = arith.mulf %20, %19 : vector<20x16x128xf32>
    %22 = arith.addf %18, %21 : vector<20x16x128xf32>
    %c0_27 = arith.constant 0 : index
    %c3 = arith.constant 3 : index
    %c0_28 = arith.constant 0 : index
    %23 = vector.load %arg5[%c0_27, %c3, %c0_28] : memref<20x32x128xf32, #tpu.memory_space<vmem>>, vector<20x16x128xf32>
    %cst_29 = arith.constant 0.109360687 : f32
    %24 = vector.broadcast %cst_29 : f32 to vector<20x16x128xf32>
    %25 = arith.mulf %24, %23 : vector<20x16x128xf32>
    %26 = arith.addf %22, %25 : vector<20x16x128xf32>
    %c0_30 = arith.constant 0 : index
    %c4_31 = arith.constant 4 : index
    %c0_32 = arith.constant 0 : index
    %27 = vector.load %arg5[%c0_30, %c4_31, %c0_32] : memref<20x32x128xf32, #tpu.memory_space<vmem>>, vector<20x16x128xf32>
    %cst_33 = arith.constant 0.213005543 : f32
    %28 = vector.broadcast %cst_33 : f32 to vector<20x16x128xf32>
    %29 = arith.mulf %28, %27 : vector<20x16x128xf32>
    %30 = arith.addf %26, %29 : vector<20x16x128xf32>
    %c0_34 = arith.constant 0 : index
    %c5 = arith.constant 5 : index
    %c0_35 = arith.constant 0 : index
    %31 = vector.load %arg5[%c0_34, %c5, %c0_35] : memref<20x32x128xf32, #tpu.memory_space<vmem>>, vector<20x16x128xf32>
    %cst_36 = arith.constant 0.266011715 : f32
    %32 = vector.broadcast %cst_36 : f32 to vector<20x16x128xf32>
    %33 = arith.mulf %32, %31 : vector<20x16x128xf32>
    %34 = arith.addf %30, %33 : vector<20x16x128xf32>
    %c0_37 = arith.constant 0 : index
    %c6 = arith.constant 6 : index
    %c0_38 = arith.constant 0 : index
    %35 = vector.load %arg5[%c0_37, %c6, %c0_38] : memref<20x32x128xf32, #tpu.memory_space<vmem>>, vector<20x16x128xf32>
    %cst_39 = arith.constant 0.213005543 : f32
    %36 = vector.broadcast %cst_39 : f32 to vector<20x16x128xf32>
    %37 = arith.mulf %36, %35 : vector<20x16x128xf32>
    %38 = arith.addf %34, %37 : vector<20x16x128xf32>
    %c0_40 = arith.constant 0 : index
    %c7 = arith.constant 7 : index
    %c0_41 = arith.constant 0 : index
    %39 = vector.load %arg5[%c0_40, %c7, %c0_41] : memref<20x32x128xf32, #tpu.memory_space<vmem>>, vector<20x16x128xf32>
    %cst_42 = arith.constant 0.109360687 : f32
    %40 = vector.broadcast %cst_42 : f32 to vector<20x16x128xf32>
    %41 = arith.mulf %40, %39 : vector<20x16x128xf32>
    %42 = arith.addf %38, %41 : vector<20x16x128xf32>
    %c0_43 = arith.constant 0 : index
    %c8_44 = arith.constant 8 : index
    %c0_45 = arith.constant 0 : index
    %43 = vector.load %arg5[%c0_43, %c8_44, %c0_45] : memref<20x32x128xf32, #tpu.memory_space<vmem>>, vector<20x16x128xf32>
    %cst_46 = arith.constant 0.0360007733 : f32
    %44 = vector.broadcast %cst_46 : f32 to vector<20x16x128xf32>
    %45 = arith.mulf %44, %43 : vector<20x16x128xf32>
    %46 = arith.addf %42, %45 : vector<20x16x128xf32>
    %c0_47 = arith.constant 0 : index
    %c9 = arith.constant 9 : index
    %c0_48 = arith.constant 0 : index
    %47 = vector.load %arg5[%c0_47, %c9, %c0_48] : memref<20x32x128xf32, #tpu.memory_space<vmem>>, vector<20x16x128xf32>
    %cst_49 = arith.constant 0.00759875821 : f32
    %48 = vector.broadcast %cst_49 : f32 to vector<20x16x128xf32>
    %49 = arith.mulf %48, %47 : vector<20x16x128xf32>
    %50 = arith.addf %46, %49 : vector<20x16x128xf32>
    %c0_50 = arith.constant 0 : index
    %c10 = arith.constant 10 : index
    %c0_51 = arith.constant 0 : index
    %51 = vector.load %arg5[%c0_50, %c10, %c0_51] : memref<20x32x128xf32, #tpu.memory_space<vmem>>, vector<20x16x128xf32>
    %cst_52 = arith.constant 0.00102838012 : f32
    %52 = vector.broadcast %cst_52 : f32 to vector<20x16x128xf32>
    %53 = arith.mulf %52, %51 : vector<20x16x128xf32>
    %54 = arith.addf %50, %53 : vector<20x16x128xf32>
    %55 = vector.shape_cast %54 : vector<20x16x128xf32> to vector<320x128xf32>
    %c0_53 = arith.constant 0 : index
    %c0_54 = arith.constant 0 : index
    %56 = vector.load %arg3[%c0_53, %c0_54] : memref<128x128xf32, #tpu.memory_space<vmem>>, vector<128x128xf32>
    %cst_55 = arith.constant dense<0.000000e+00> : vector<320x128xf32>
    %57 = tpu.matmul %55, %56, %cst_55 {dimension_numbers = #tpu.dot_dimension_numbers<[1], [0], [0], [1], [0, 0, 1, 1], [], []>} : vector<320x128xf32>, vector<128x128xf32>, vector<320x128xf32> -> vector<320x128xf32>
    %58 = vector.extract_strided_slice %57 {offsets = [0, 0], sizes = [64, 128], strides = [1, 1]} : vector<320x128xf32> to vector<64x128xf32>
    %59 = vector.extract_strided_slice %57 {offsets = [64, 0], sizes = [64, 128], strides = [1, 1]} : vector<320x128xf32> to vector<64x128xf32>
    %60 = vector.extract_strided_slice %57 {offsets = [128, 0], sizes = [64, 128], strides = [1, 1]} : vector<320x128xf32> to vector<64x128xf32>
    %61 = vector.extract_strided_slice %57 {offsets = [192, 0], sizes = [64, 128], strides = [1, 1]} : vector<320x128xf32> to vector<64x128xf32>
    %62 = vector.extract_strided_slice %57 {offsets = [256, 0], sizes = [64, 128], strides = [1, 1]} : vector<320x128xf32> to vector<64x128xf32>
    %63 = arith.mulf %58, %58 : vector<64x128xf32>
    %64 = arith.mulf %59, %59 : vector<64x128xf32>
    %65 = arith.mulf %58, %59 : vector<64x128xf32>
    %66 = arith.subf %60, %63 : vector<64x128xf32>
    %67 = arith.subf %61, %64 : vector<64x128xf32>
    %68 = arith.subf %62, %65 : vector<64x128xf32>
    %cst_56 = arith.constant 2.000000e+00 : f32
    %69 = vector.broadcast %cst_56 : f32 to vector<64x128xf32>
    %70 = arith.mulf %69, %65 : vector<64x128xf32>
    %cst_57 = arith.constant 9.99999974E-5 : f32
    %71 = vector.broadcast %cst_57 : f32 to vector<64x128xf32>
    %72 = arith.addf %70, %71 : vector<64x128xf32>
    %cst_58 = arith.constant 2.000000e+00 : f32
    %73 = vector.broadcast %cst_58 : f32 to vector<64x128xf32>
    %74 = arith.mulf %73, %68 : vector<64x128xf32>
    %cst_59 = arith.constant 8.99999984E-4 : f32
    %75 = vector.broadcast %cst_59 : f32 to vector<64x128xf32>
    %76 = arith.addf %74, %75 : vector<64x128xf32>
    %77 = arith.addf %63, %64 : vector<64x128xf32>
    %cst_60 = arith.constant 9.99999974E-5 : f32
    %78 = vector.broadcast %cst_60 : f32 to vector<64x128xf32>
    %79 = arith.addf %77, %78 : vector<64x128xf32>
    %80 = arith.addf %66, %67 : vector<64x128xf32>
    %cst_61 = arith.constant 8.99999984E-4 : f32
    %81 = vector.broadcast %cst_61 : f32 to vector<64x128xf32>
    %82 = arith.addf %80, %81 : vector<64x128xf32>
    %83 = arith.mulf %72, %76 : vector<64x128xf32>
    %84 = arith.mulf %79, %82 : vector<64x128xf32>
    %85 = arith.divf %83, %84 : vector<64x128xf32>
    %86 = tpu.iota {dimensions = array<i32: 1>} : vector<64x128xi32>
    %c16_i32 = arith.constant 16 : i32
    %87 = vector.broadcast %c16_i32 : i32 to vector<64x128xi32>
    %88 = arith.cmpi slt, %86, %87 : vector<64x128xi32>
    %cst_62 = arith.constant 0.000000e+00 : f32
    %89 = vector.broadcast %cst_62 : f32 to vector<64x128xf32>
    %90 = arith.select %88, %85, %89 : vector<64x128xi1>, vector<64x128xf32>
    %91 = vector.shape_cast %90 : vector<64x128xf32> to vector<1x64x128xf32>
    %cst_63 = arith.constant dense<0.000000e+00> : vector<1xf32>
    %92 = vector.multi_reduction <add>, %91, %cst_63 [1, 2] : vector<1x64x128xf32> to vector<1xf32>
    %93 = vector.shape_cast %92 : vector<1xf32> to vector<1x1x1xf32>
    %94 = vector.extract %93[0, 0, 0] : f32 from vector<1x1x1xf32>
    %cst_64 = arith.constant 1.024000e+03 : f32
    %95 = arith.divf %94, %cst_64 : f32
    %cst_65 = arith.constant 1.000000e+00 : f32
    %96 = arith.subf %cst_65, %95 : f32
    %97 = arith.index_cast %arg0 : i32 to index
    %98 = memref.load %arg4[%97] : memref<2xf32, #tpu.memory_space<smem>>
    memref.store %96, %arg4[%97] : memref<2xf32, #tpu.memory_space<smem>>
    return
  }
  func.func @transform_0(%arg0: i32) -> (i32, i32, i32, i32) {
    %c0_i32 = arith.constant 0 : i32
    %c0_i32_0 = arith.constant 0 : i32
    %c0_i32_1 = arith.constant 0 : i32
    %c0_i32_2 = arith.constant 0 : i32
    return %arg0, %c0_i32, %c0_i32_0, %c0_i32_1 : i32, i32, i32, i32
  }
  func.func @transform_1(%arg0: i32) -> (i32, i32, i32, i32) {
    %c0_i32 = arith.constant 0 : i32
    %c0_i32_0 = arith.constant 0 : i32
    %c0_i32_1 = arith.constant 0 : i32
    %c0_i32_2 = arith.constant 0 : i32
    return %arg0, %c0_i32, %c0_i32_0, %c0_i32_1 : i32, i32, i32, i32
  }
  func.func @transform_2(%arg0: i32) -> (i32, i32) {
    %c0_i32 = arith.constant 0 : i32
    %c0_i32_0 = arith.constant 0 : i32
    %c0_i32_1 = arith.constant 0 : i32
    return %c0_i32, %c0_i32_0 : i32, i32
  }
  func.func @transform_3(%arg0: i32) -> i32 {
    %c0_i32 = arith.constant 0 : i32
    %c0_i32_0 = arith.constant 0 : i32
    return %c0_i32 : i32
  }
}

</mosaic_0001>

<llo_original>
// kernel: tpu_custom_call.1
$region0: #{tpu_custom_call.1}
  #allocation0 [shape = 'u32[]', space=smem, size = 0x4, offset = 0x4, fixed_abs, tag = 'smem constant byte address 0x4 - core index']
  #allocation1 [shape = 'u32[144,128]{1,0:T(1,128)}', space=vmem, size = 0x12000, scoped, tag = 'internal scratch']
  #allocation2 [shape = 'f32[20,32,128]{2,1,0:T(8,128)}', space=vmem, size = 0x50000, scoped, tag = 'scratch operand']
  %s0 = inlined_call_operand.hbm [shape: f32[2,4,32,128], index: 0, kind: input, shape index: {}]
  %s1 = inlined_call_operand.hbm [shape: f32[2,4,32,128], index: 1, kind: input, shape index: {}]
  %s2 = inlined_call_operand.hbm [shape: f32[128,128], index: 2, kind: input, shape index: {}]
  %s3 = inlined_call_operand.hbm [shape: f32[2], index: 3, kind: output, shape index: {}]
  %s4 = sld [smem:[#allocation0]]
  $region57: #{tpu_custom_call.1} parent=0
    _
  %s6 = ssub.s32 1, %s4
  %s7 = scalar_select 0, %s6, %s4
  $region1: #{tpu_custom_call.1} parent=0
    #allocation3 [shape = 'u8[131072]{0}', space=vmem, size = 0x20000, scoped, tag = 'input window, operand 0']
    #allocation4 [shape = 's32[2]{0}', space=sflag, size = 0x8, scoped, tag = 'scoped memory for tpu_custom_call.1']
    #allocation5 [shape = 's32[2]{0}', space=sflag, size = 0x8, scoped, tag = 'scoped memory for tpu_custom_call.1']
    #allocation6 [shape = 'u8[131072]{0}', space=vmem, size = 0x20000, scoped, tag = 'input window, operand 1']
    #allocation7 [shape = 's32[2]{0}', space=sflag, size = 0x8, scoped, tag = 'scoped memory for tpu_custom_call.1']
    #allocation8 [shape = 'u8[65536]{0}', space=vmem, size = 0x10000, scoped, tag = 'input window, operand 2, single buffered']
    #allocation9 [shape = 'u8[512]{0}', space=smem, size = 0x200, scoped, tag = 'output window, operand 0, single buffered']
    %8 = vsyncpa [#allocation4], 0
    %s9 = scalar_lea.sflag [#allocation4], 1
    %10 = vsyncpa %s9, 0
    %11 = vsyncpa [#allocation7], 0
    %s12 = scalar_lea.sflag [#allocation7], 1
    %13 = vsyncpa %s12, 0
    %14 = vsyncpa [#allocation5], 0
    loop: start=0, step=1, limit=4
    $region2: #{tpu_custom_call.1} parent=1 // loop_pre_header
      _
    $region3: #{tpu_custom_call.1} parent=1 // loop_header
      %s16 = sphi 0, %s20
      %p17 = scmp.ge.s32.totalorder %s16, 4
      %s26 = sphi 0, %s28
      %s29 = sphi 0, %s26
      %s30 = sphi 0, %s29
      %s46 = sphi 0, %s30
      %s52 = sphi 0, %s54
      %s55 = sphi 0, %s52
      %s56 = sphi 0, %s55
      %s72 = sphi 0, %s56
      %s76 = sphi 0, %s76
      %s78 = sphi 0, %s76
      %s79 = sphi 0, %s78
      %s93 = sphi 0, %s79
      %s97 = sphi 0, %s97
      %s99 = sphi 0, %s97
      %s100 = sphi 0, %s99
      %s114 = sphi 0, %s100
    $region4: #{tpu_custom_call.1} parent=1 // loop_header_branch
      %19 = sbr.rel (%p17) target = $region8
    $region5: #{tpu_custom_call.1} parent=1 // loop_body
      %s21 = ssub.s32 %s16, 1
      %s22 = ssub.s32 %s16, 2
      %s23 = sadd.s32 %s16, 1
      %s24 = ssub.s32 %s16, %s23
      %p25 = scmp.eq.s32.totalorder %s24, 0
      %s27 = sadd.s32 %s26, 1
      %s28 = scalar_select %p25, %s26, %s27
      %p31 = pneg %p25
      %p32 = scmp.eq.s32.totalorder %s16, 1
      %p33 = por %p31, %p32
      %p34 = scmp.ne.s32.totalorder %s26, %s29
      %p35 = scmp.eq.s32.totalorder %s16, 0
      %p36 = por %p34, %p35
      %p37 = scmp.ne.s32.totalorder %s26, %s29
      %p38 = scmp.eq.s32.totalorder %s21, 1
      %p39 = por %p37, %p38
      %p40 = scmp.ne.s32.totalorder %s29, %s30
      %p41 = scmp.eq.s32.totalorder %s21, 0
      %p42 = por %p40, %p41
      %p43 = scmp.ne.s32.totalorder %s29, %s30
      %p44 = scmp.eq.s32.totalorder %s22, 1
      %p45 = por %p43, %p44
      %p47 = scmp.ne.s32.totalorder %s30, %s46
      %p48 = scmp.eq.s32.totalorder %s22, 0
      %p49 = por %p47, %p48
      %s50 = ssub.s32 %s16, %s23
      %p51 = scmp.eq.s32.totalorder %s50, 0
      %s53 = sadd.s32 %s52, 1
      %s54 = scalar_select %p51, %s52, %s53
      %p57 = pneg %p51
      %p58 = scmp.eq.s32.totalorder %s16, 1
      %p59 = por %p57, %p58
      %p60 = scmp.ne.s32.totalorder %s52, %s55
      %p61 = scmp.eq.s32.totalorder %s16, 0
      %p62 = por %p60, %p61
      %p63 = scmp.ne.s32.totalorder %s52, %s55
      %p64 = scmp.eq.s32.totalorder %s21, 1
      %p65 = por %p63, %p64
      %p66 = scmp.ne.s32.totalorder %s55, %s56
      %p67 = scmp.eq.s32.totalorder %s21, 0
      %p68 = por %p66, %p67
      %p69 = scmp.ne.s32.totalorder %s55, %s56
      %p70 = scmp.eq.s32.totalorder %s22, 1
      %p71 = por %p69, %p70
      %p73 = scmp.ne.s32.totalorder %s56, %s72
      %p74 = scmp.eq.s32.totalorder %s22, 0
      %p75 = por %p73, %p74
      %s77 = sadd.s32 %s76, 1
      %p80 = scmp.eq.s32.totalorder %s16, 1
      %p81 = scmp.ne.s32.totalorder %s76, %s78
      %p82 = scmp.eq.s32.totalorder %s16, 0
      %p83 = por %p81, %p82
      %p84 = scmp.ne.s32.totalorder %s76, %s78
      %p85 = scmp.eq.s32.totalorder %s21, 1
      %p86 = por %p84, %p85
      %p87 = scmp.ne.s32.totalorder %s78, %s79
      %p88 = scmp.eq.s32.totalorder %s21, 0
      %p89 = por %p87, %p88
      %p90 = scmp.ne.s32.totalorder %s78, %s79
      %p91 = scmp.eq.s32.totalorder %s22, 1
      %p92 = por %p90, %p91
      %p94 = scmp.ne.s32.totalorder %s79, %s93
      %p95 = scmp.eq.s32.totalorder %s22, 0
      %p96 = por %p94, %p95
      %s98 = sadd.s32 %s97, 1
      %p101 = scmp.eq.s32.totalorder %s16, 1
      %p102 = scmp.ne.s32.totalorder %s97, %s99
      %p103 = scmp.eq.s32.totalorder %s16, 0
      %p104 = por %p102, %p103
      %p105 = scmp.ne.s32.totalorder %s97, %s99
      %p106 = scmp.eq.s32.totalorder %s21, 1
      %p107 = por %p105, %p106
      %p108 = scmp.ne.s32.totalorder %s99, %s100
      %p109 = scmp.eq.s32.totalorder %s21, 0
      %p110 = por %p108, %p109
      %p111 = scmp.ne.s32.totalorder %s99, %s100
      %p112 = scmp.eq.s32.totalorder %s22, 1
      %p113 = por %p111, %p112
      %p115 = scmp.ne.s32.totalorder %s100, %s114
      %p116 = scmp.eq.s32.totalorder %s22, 0
      %p117 = por %p115, %p116
      %p118 = scmp.le.s32.totalorder 1, %s16
      %p119 = scmp.lt.s32.totalorder %s16, 3
      %p120 = pnand %p118, %p119
      %p121 = pneg %p120
      // Predicated region
      $region9: #{tpu_custom_call.1} parent=5 // pred_check
        _
      $region10: #{tpu_custom_call.1} parent=5 // pred_check_branch
        %123 = sbr.rel (%p120) target = $region12
      $region11: #{tpu_custom_call.1} parent=5 // pred_region
        %s124 = ssub.s32 %s16, 1
        // Predicated region
        $region13: #{tpu_custom_call.1} parent=11 // pred_check
          %p125 = pneg %p89
        $region14: #{tpu_custom_call.1} parent=11 // pred_check_branch
          %127 = sbr.rel (%p125) target = $region16
        $region15: #{tpu_custom_call.1} parent=11 // pred_region
          %s129 = ssub.s32 2048, 2048
          %130 = vsyncadd [#allocation7], %s129
          %s131 = sshll.u32 [#allocation8], 4
          %s132 = int_to_ptr.vmem [resolvable:$true] %s131
          %137 = dma.hbm_to_vmem [thread:$0]  %s2, 2048, %s132, [#allocation7], 128, 128, 8
        $region16: #{tpu_custom_call.1} parent=11 // pred_fallthru
          _
      $region12: #{tpu_custom_call.1} parent=5 // pred_fallthru
        _
      %p138 = scmp.lt.s32.totalorder %s16, 2
      // Predicated region
      $region17: #{tpu_custom_call.1} parent=5 // pred_check
        %p139 = pneg %p138
      $region18: #{tpu_custom_call.1} parent=5 // pred_check_branch
        %141 = sbr.rel (%p139) target = $region20
      $region19: #{tpu_custom_call.1} parent=5 // pred_region
        // Predicated region
        $region21: #{tpu_custom_call.1} parent=19 // pred_check
          %p142 = pneg %p36
        $region22: #{tpu_custom_call.1} parent=19 // pred_check_branch
          %144 = sbr.rel (%p142) target = $region24
        $region23: #{tpu_custom_call.1} parent=19 // pred_region
          %s145 = sand.u32 %s26, 1
          %s146 = scalar_lea.sflag [#allocation4], %s145
          %s147 = sand.u32 %s26, 1
          %s148 = smul.addr %s147, 128
          %s149 = scalar_lea.vmem [#allocation3], %s148
          %s151 = ssub.s32 2048, 2048
          %152 = vsyncadd %s146, %s151
          %s153 = smul.addr %s16, 16
          %s154 = smul.addr %s153, 128
          %s155 = scalar_lea.hbm %s0, %s154
          %s156 = sshll.u32 %s149, 4
          %s157 = int_to_ptr.vmem [resolvable:$true] %s156
          %162 = dma.hbm_to_vmem [thread:$0]  %s155, 2048, %s157, %s146, 128, 128, 8
        $region24: #{tpu_custom_call.1} parent=19 // pred_fallthru
          _
        // Predicated region
        $region25: #{tpu_custom_call.1} parent=19 // pred_check
          %p163 = pneg %p62
        $region26: #{tpu_custom_call.1} parent=19 // pred_check_branch
          %165 = sbr.rel (%p163) target = $region28
        $region27: #{tpu_custom_call.1} parent=19 // pred_region
          %s166 = sand.u32 %s16, 1
          %s167 = scalar_lea.sflag [#allocation7], %s166
          %s168 = sand.u32 %s52, 1
          %s169 = smul.addr %s168, 128
          %s170 = scalar_lea.vmem [#allocation6], %s169
          %s172 = ssub.s32 2048, 2048
          %173 = vsyncadd %s167, %s172
          %s174 = smul.addr %s16, 16
          %s175 = smul.addr %s174, 128
          %s176 = scalar_lea.hbm %s1, %s175
          %s177 = sshll.u32 %s170, 4
          %s178 = int_to_ptr.vmem [resolvable:$true] %s177
          %183 = dma.hbm_to_vmem [thread:$0]  %s176, 2048, %s178, %s167, 128, 128, 8
        $region28: #{tpu_custom_call.1} parent=19 // pred_fallthru
          _
      $region20: #{tpu_custom_call.1} parent=5 // pred_fallthru
        _
      %p184 = scmp.le.s32.totalorder 1, %s16
      %p185 = scmp.lt.s32.totalorder %s16, 3
      %p186 = pnand %p184, %p185
      %p187 = pneg %p186
      // Predicated region
      $region29: #{tpu_custom_call.1} parent=5 // pred_check
        _
      $region30: #{tpu_custom_call.1} parent=5 // pred_check_branch
        %189 = sbr.rel (%p186) target = $region32
      $region31: #{tpu_custom_call.1} parent=5 // pred_region
        %s190 = ssub.s32 %s16, 1
        %s191 = sand.u32 %s29, 1
        %s192 = scalar_lea.sflag [#allocation4], %s191
        %s193 = sand.u32 %s29, 1
        %s194 = smul.addr %s193, 128
        %s195 = scalar_lea.vmem [#allocation3], %s194
        // Predicated region
        $region33: #{tpu_custom_call.1} parent=31 // pred_check
          %p196 = pneg %p42
        $region34: #{tpu_custom_call.1} parent=31 // pred_check_branch
          %198 = sbr.rel (%p196) target = $region36
        $region35: #{tpu_custom_call.1} parent=31 // pred_region
          %199 = dma.done %s192, 2048
        $region36: #{tpu_custom_call.1} parent=31 // pred_fallthru
          _
        %s200 = sand.u32 %s21, 1
        %s201 = scalar_lea.sflag [#allocation7], %s200
        %s202 = sand.u32 %s55, 1
        %s203 = smul.addr %s202, 128
        %s204 = scalar_lea.vmem [#allocation6], %s203
        // Predicated region
        $region37: #{tpu_custom_call.1} parent=31 // pred_check
          %p205 = pneg %p68
        $region38: #{tpu_custom_call.1} parent=31 // pred_check_branch
          %207 = sbr.rel (%p205) target = $region40
        $region39: #{tpu_custom_call.1} parent=31 // pred_region
          %208 = dma.done %s201, 2048
        $region40: #{tpu_custom_call.1} parent=31 // pred_fallthru
          _
        // Predicated region
        $region41: #{tpu_custom_call.1} parent=31 // pred_check
          %p209 = pneg %p89
        $region42: #{tpu_custom_call.1} parent=31 // pred_check_branch
          %211 = sbr.rel (%p209) target = $region44
        $region43: #{tpu_custom_call.1} parent=31 // pred_region
          %212 = dma.done [#allocation7], 2048
        $region44: #{tpu_custom_call.1} parent=31 // pred_fallthru
          _
        %s213 = sand.u32 %s29, 1
        %s214 = scalar_lea.sflag [#allocation4], %s213
        %s215 = sand.u32 %s29, 1
        %s216 = smul.addr %s215, 128
        %s217 = scalar_lea.vmem [#allocation3], %s216
        %p218 = pneg %p42
        %p219 = pneg %p39
        %s220 = sand.u32 %s21, 1
        %s221 = scalar_lea.sflag [#allocation7], %s220
        %s222 = sand.u32 %s55, 1
        %s223 = smul.addr %s222, 128
        %s224 = scalar_lea.vmem [#allocation6], %s223
        %p225 = pneg %p68
        %p226 = pneg %p65
        %p227 = pneg %p89
        %p228 = pneg %p86
        %p229 = pneg %p110
        %p230 = pneg %p107
        %v231 = vld [vmem:[%s195] sm:$0xff]
        %v232 = vld [vmem:[%s195 + $0x8] sm:$0xff]
        %v233 = vld [vmem:[%s195 + $0x10] sm:$0xff]
        %v234 = vld [vmem:[%s195 + $0x18] sm:$0xff]
        %v235 = vld [vmem:[%s195 + $0x20] sm:$0xff]
        %v236 = vld [vmem:[%s195 + $0x28] sm:$0xff]
        %v237 = vld [vmem:[%s195 + $0x30] sm:$0xff]
        %v238 = vld [vmem:[%s195 + $0x38] sm:$0xff]
        %v239 = vld [vmem:[%s195 + $0x40] sm:$0xff]
        %v240 = vld [vmem:[%s195 + $0x48] sm:$0xff]
        %v241 = vld [vmem:[%s195 + $0x50] sm:$0xff]
        %v242 = vld [vmem:[%s195 + $0x58] sm:$0xff]
        %v243 = vld [vmem:[%s195 + $0x60] sm:$0xff]
        %v244 = vld [vmem:[%s195 + $0x68] sm:$0xff]
        %v245 = vld [vmem:[%s195 + $0x70] sm:$0xff]
        %v246 = vld [vmem:[%s195 + $0x78] sm:$0xff]
        %v247 = vld [vmem:[%s204] sm:$0xff]
        %v248 = vld [vmem:[%s204 + $0x8] sm:$0xff]
        %v249 = vld [vmem:[%s204 + $0x10] sm:$0xff]
        %v250 = vld [vmem:[%s204 + $0x18] sm:$0xff]
        %v251 = vld [vmem:[%s204 + $0x20] sm:$0xff]
        %v252 = vld [vmem:[%s204 + $0x28] sm:$0xff]
        %v253 = vld [vmem:[%s204 + $0x30] sm:$0xff]
        %v254 = vld [vmem:[%s204 + $0x38] sm:$0xff]
        %v255 = vld [vmem:[%s204 + $0x40] sm:$0xff]
        %v256 = vld [vmem:[%s204 + $0x48] sm:$0xff]
        %v257 = vld [vmem:[%s204 + $0x50] sm:$0xff]
        %v258 = vld [vmem:[%s204 + $0x58] sm:$0xff]
        %v259 = vld [vmem:[%s204 + $0x60] sm:$0xff]
        %v260 = vld [vmem:[%s204 + $0x68] sm:$0xff]
        %v261 = vld [vmem:[%s204 + $0x70] sm:$0xff]
        %v262 = vld [vmem:[%s204 + $0x78] sm:$0xff]
        %263 = vst [vmem:[#allocation2] sm:$0xff] %v231
        %264 = vst [vmem:[#allocation2 + $0x8] sm:$0xff] %v232
        %265 = vst [vmem:[#allocation2 + $0x10] sm:$0xff] %v233
        %266 = vst [vmem:[#allocation2 + $0x18] sm:$0xff] %v234
        %267 = vst [vmem:[#allocation2 + $0x20] sm:$0xff] %v235
        %268 = vst [vmem:[#allocation2 + $0x28] sm:$0xff] %v236
        %269 = vst [vmem:[#allocation2 + $0x30] sm:$0xff] %v237
        %270 = vst [vmem:[#allocation2 + $0x38] sm:$0xff] %v238
        %271 = vst [vmem:[#allocation2 + $0x40] sm:$0xff] %v239
        %272 = vst [vmem:[#allocation2 + $0x48] sm:$0xff] %v240
        %273 = vst [vmem:[#allocation2 + $0x50] sm:$0xff] %v241
        %274 = vst [vmem:[#allocation2 + $0x58] sm:$0xff] %v242
        %275 = vst [vmem:[#allocation2 + $0x60] sm:$0xff] %v243
        %276 = vst [vmem:[#allocation2 + $0x68] sm:$0xff] %v244
        %277 = vst [vmem:[#allocation2 + $0x70] sm:$0xff] %v245
        %278 = vst [vmem:[#allocation2 + $0x78] sm:$0xff] %v246
        %s279 = scalar_lea.vmem [#allocation2], 128
        %280 = vst [vmem:[%s279] sm:$0xff] %v247
        %281 = vst [vmem:[%s279 + $0x8] sm:$0xff] %v248
        %282 = vst [vmem:[%s279 + $0x10] sm:$0xff] %v249
        %283 = vst [vmem:[%s279 + $0x18] sm:$0xff] %v250
        %284 = vst [vmem:[%s279 + $0x20] sm:$0xff] %v251
        %285 = vst [vmem:[%s279 + $0x28] sm:$0xff] %v252
        %286 = vst [vmem:[%s279 + $0x30] sm:$0xff] %v253
        %287 = vst [vmem:[%s279 + $0x38] sm:$0xff] %v254
        %288 = vst [vmem:[%s279 + $0x40] sm:$0xff] %v255
        %289 = vst [vmem:[%s279 + $0x48] sm:$0xff] %v256
        %290 = vst [vmem:[%s279 + $0x50] sm:$0xff] %v257
        %291 = vst [vmem:[%s279 + $0x58] sm:$0xff] %v258
        %292 = vst [vmem:[%s279 + $0x60] sm:$0xff] %v259
        %293 = vst [vmem:[%s279 + $0x68] sm:$0xff] %v260
        %294 = vst [vmem:[%s279 + $0x70] sm:$0xff] %v261
        %295 = vst [vmem:[%s279 + $0x78] sm:$0xff] %v262
        %v296 = vmul.f32 %v231, %v231
        %v297 = vmul.f32 %v232, %v232
        %v298 = vmul.f32 %v233, %v233
        %v299 = vmul.f32 %v234, %v234
        %v300 = vmul.f32 %v235, %v235
        %v301 = vmul.f32 %v236, %v236
        %v302 = vmul.f32 %v237, %v237
        %v303 = vmul.f32 %v238, %v238
        %v304 = vmul.f32 %v239, %v239
        %v305 = vmul.f32 %v240, %v240
        %v306 = vmul.f32 %v241, %v241
        %v307 = vmul.f32 %v242, %v242
        %v308 = vmul.f32 %v243, %v243
        %v309 = vmul.f32 %v244, %v244
        %v310 = vmul.f32 %v245, %v245
        %v311 = vmul.f32 %v246, %v246
        %s312 = scalar_lea.vmem [#allocation2], 256
        %313 = vst [vmem:[%s312] sm:$0xff] %v296
        %314 = vst [vmem:[%s312 + $0x8] sm:$0xff] %v297
        %315 = vst [vmem:[%s312 + $0x10] sm:$0xff] %v298
        %316 = vst [vmem:[%s312 + $0x18] sm:$0xff] %v299
        %317 = vst [vmem:[%s312 + $0x20] sm:$0xff] %v300
        %318 = vst [vmem:[%s312 + $0x28] sm:$0xff] %v301
        %319 = vst [vmem:[%s312 + $0x30] sm:$0xff] %v302
        %320 = vst [vmem:[%s312 + $0x38] sm:$0xff] %v303
        %321 = vst [vmem:[%s312 + $0x40] sm:$0xff] %v304
        %322 = vst [vmem:[%s312 + $0x48] sm:$0xff] %v305
        %323 = vst [vmem:[%s312 + $0x50] sm:$0xff] %v306
        %324 = vst [vmem:[%s312 + $0x58] sm:$0xff] %v307
        %325 = vst [vmem:[%s312 + $0x60] sm:$0xff] %v308
        %326 = vst [vmem:[%s312 + $0x68] sm:$0xff] %v309
        %327 = vst [vmem:[%s312 + $0x70] sm:$0xff] %v310
        %328 = vst [vmem:[%s312 + $0x78] sm:$0xff] %v311
        %v329 = vmul.f32 %v247, %v247
        %v330 = vmul.f32 %v248, %v248
        %v331 = vmul.f32 %v249, %v249
        %v332 = vmul.f32 %v250, %v250
        %v333 = vmul.f32 %v251, %v251
        %v334 = vmul.f32 %v252, %v252
        %v335 = vmul.f32 %v253, %v253
        %v336 = vmul.f32 %v254, %v254
        %v337 = vmul.f32 %v255, %v255
        %v338 = vmul.f32 %v256, %v256
        %v339 = vmul.f32 %v257, %v257
        %v340 = vmul.f32 %v258, %v258
        %v341 = vmul.f32 %v259, %v259
        %v342 = vmul.f32 %v260, %v260
        %v343 = vmul.f32 %v261, %v261
        %v344 = vmul.f32 %v262, %v262
        %s345 = scalar_lea.vmem [#allocation2], 384
        %346 = vst [vmem:[%s345] sm:$0xff] %v329
        %347 = vst [vmem:[%s345 + $0x8] sm:$0xff] %v330
        %348 = vst [vmem:[%s345 + $0x10] sm:$0xff] %v331
        %349 = vst [vmem:[%s345 + $0x18] sm:$0xff] %v332
        %350 = vst [vmem:[%s345 + $0x20] sm:$0xff] %v333
        %351 = vst [vmem:[%s345 + $0x28] sm:$0xff] %v334
        %352 = vst [vmem:[%s345 + $0x30] sm:$0xff] %v335
        %353 = vst [vmem:[%s345 + $0x38] sm:$0xff] %v336
        %354 = vst [vmem:[%s345 + $0x40] sm:$0xff] %v337
        %355 = vst [vmem:[%s345 + $0x48] sm:$0xff] %v338
        %356 = vst [vmem:[%s345 + $0x50] sm:$0xff] %v339
        %357 = vst [vmem:[%s345 + $0x58] sm:$0xff] %v340
        %358 = vst [vmem:[%s345 + $0x60] sm:$0xff] %v341
        %359 = vst [vmem:[%s345 + $0x68] sm:$0xff] %v342
        %360 = vst [vmem:[%s345 + $0x70] sm:$0xff] %v343
        %361 = vst [vmem:[%s345 + $0x78] sm:$0xff] %v344
        %v362 = vmul.f32 %v231, %v247
        %v363 = vmul.f32 %v232, %v248
        %v364 = vmul.f32 %v233, %v249
        %v365 = vmul.f32 %v234, %v250
        %v366 = vmul.f32 %v235, %v251
        %v367 = vmul.f32 %v236, %v252
        %v368 = vmul.f32 %v237, %v253
        %v369 = vmul.f32 %v238, %v254
        %v370 = vmul.f32 %v239, %v255
        %v371 = vmul.f32 %v240, %v256
        %v372 = vmul.f32 %v241, %v257
        %v373 = vmul.f32 %v242, %v258
        %v374 = vmul.f32 %v243, %v259
        %v375 = vmul.f32 %v244, %v260
        %v376 = vmul.f32 %v245, %v261
        %v377 = vmul.f32 %v246, %v262
        %s378 = scalar_lea.vmem [#allocation2], 512
        %379 = vst [vmem:[%s378] sm:$0xff] %v362
        %380 = vst [vmem:[%s378 + $0x8] sm:$0xff] %v363
        %381 = vst [vmem:[%s378 + $0x10] sm:$0xff] %v364
        %382 = vst [vmem:[%s378 + $0x18] sm:$0xff] %v365
        %383 = vst [vmem:[%s378 + $0x20] sm:$0xff] %v366
        %384 = vst [vmem:[%s378 + $0x28] sm:$0xff] %v367
        %385 = vst [vmem:[%s378 + $0x30] sm:$0xff] %v368
        %386 = vst [vmem:[%s378 + $0x38] sm:$0xff] %v369
        %387 = vst [vmem:[%s378 + $0x40] sm:$0xff] %v370
        %388 = vst [vmem:[%s378 + $0x48] sm:$0xff] %v371
        %389 = vst [vmem:[%s378 + $0x50] sm:$0xff] %v372
        %390 = vst [vmem:[%s378 + $0x58] sm:$0xff] %v373
        %391 = vst [vmem:[%s378 + $0x60] sm:$0xff] %v374
        %392 = vst [vmem:[%s378 + $0x68] sm:$0xff] %v375
        %393 = vst [vmem:[%s378 + $0x70] sm:$0xff] %v376
        %394 = vst [vmem:[%s378 + $0x78] sm:$0xff] %v377
        %v395 = vld [vmem:[#allocation2] sm:$0xff]
        %v396 = vld [vmem:[#allocation2 + $0x8] sm:$0xff]
        %v397 = vld [vmem:[#allocation2 + $0x20] sm:$0xff]
        %v398 = vld [vmem:[#allocation2 + $0x28] sm:$0xff]
        %v399 = vld [vmem:[#allocation2 + $0x40] sm:$0xff]
        %v400 = vld [vmem:[#allocation2 + $0x48] sm:$0xff]
        %v401 = vld [vmem:[#allocation2 + $0x60] sm:$0xff]
        %v402 = vld [vmem:[#allocation2 + $0x68] sm:$0xff]
        %v403 = vld [vmem:[#allocation2 + $0x80] sm:$0xff]
        %v404 = vld [vmem:[#allocation2 + $0x88] sm:$0xff]
        %v405 = vld [vmem:[#allocation2 + $0xa0] sm:$0xff]
        %v406 = vld [vmem:[#allocation2 + $0xa8] sm:$0xff]
        %v407 = vld [vmem:[#allocation2 + $0xc0] sm:$0xff]
        %v408 = vld [vmem:[#allocation2 + $0xc8] sm:$0xff]
        %v409 = vld [vmem:[#allocation2 + $0xe0] sm:$0xff]
        %v410 = vld [vmem:[#allocation2 + $0xe8] sm:$0xff]
        %v411 = vld [vmem:[#allocation2 + $0x100] sm:$0xff]
        %v412 = vld [vmem:[#allocation2 + $0x108] sm:$0xff]
        %v413 = vld [vmem:[#allocation2 + $0x120] sm:$0xff]
        %v414 = vld [vmem:[#allocation2 + $0x128] sm:$0xff]
        %v415 = vld [vmem:[#allocation2 + $0x140] sm:$0xff]
        %v416 = vld [vmem:[#allocation2 + $0x148] sm:$0xff]
        %v417 = vld [vmem:[#allocation2 + $0x160] sm:$0xff]
        %v418 = vld [vmem:[#allocation2 + $0x168] sm:$0xff]
        %v419 = vld [vmem:[#allocation2 + $0x180] sm:$0xff]
        %v420 = vld [vmem:[#allocation2 + $0x188] sm:$0xff]
        %v421 = vld [vmem:[#allocation2 + $0x1a0] sm:$0xff]
        %v422 = vld [vmem:[#allocation2 + $0x1a8] sm:$0xff]
        %v423 = vld [vmem:[#allocation2 + $0x1c0] sm:$0xff]
        %v424 = vld [vmem:[#allocation2 + $0x1c8] sm:$0xff]
        %v425 = vld [vmem:[#allocation2 + $0x1e0] sm:$0xff]
        %v426 = vld [vmem:[#allocation2 + $0x1e8] sm:$0xff]
        %v427 = vld [vmem:[#allocation2 + $0x200] sm:$0xff]
        %v428 = vld [vmem:[#allocation2 + $0x208] sm:$0xff]
        %v429 = vld [vmem:[#allocation2 + $0x220] sm:$0xff]
        %v430 = vld [vmem:[#allocation2 + $0x228] sm:$0xff]
        %v431 = vld [vmem:[#allocation2 + $0x240] sm:$0xff]
        %v432 = vld [vmem:[#allocation2 + $0x248] sm:$0xff]
        %v433 = vld [vmem:[#allocation2 + $0x260] sm:$0xff]
        %v434 = vld [vmem:[#allocation2 + $0x268] sm:$0xff]
        %v435 = vmul.f32 %v395, 0.0010283801
        %v436 = vmul.f32 %v396, 0.0010283801
        %v437 = vmul.f32 %v397, 0.0010283801
        %v438 = vmul.f32 %v398, 0.0010283801
        %v439 = vmul.f32 %v399, 0.0010283801
        %v440 = vmul.f32 %v400, 0.0010283801
        %v441 = vmul.f32 %v401, 0.0010283801
        %v442 = vmul.f32 %v402, 0.0010283801
        %v443 = vmul.f32 %v403, 0.0010283801
        %v444 = vmul.f32 %v404, 0.0010283801
        %v445 = vmul.f32 %v405, 0.0010283801
        %v446 = vmul.f32 %v406, 0.0010283801
        %v447 = vmul.f32 %v407, 0.0010283801
        %v448 = vmul.f32 %v408, 0.0010283801
        %v449 = vmul.f32 %v409, 0.0010283801
        %v450 = vmul.f32 %v410, 0.0010283801
        %v451 = vmul.f32 %v411, 0.0010283801
        %v452 = vmul.f32 %v412, 0.0010283801
        %v453 = vmul.f32 %v413, 0.0010283801
        %v454 = vmul.f32 %v414, 0.0010283801
        %v455 = vmul.f32 %v415, 0.0010283801
        %v456 = vmul.f32 %v416, 0.0010283801
        %v457 = vmul.f32 %v417, 0.0010283801
        %v458 = vmul.f32 %v418, 0.0010283801
        %v459 = vmul.f32 %v419, 0.0010283801
        %v460 = vmul.f32 %v420, 0.0010283801
        %v461 = vmul.f32 %v421, 0.0010283801
        %v462 = vmul.f32 %v422, 0.0010283801
        %v463 = vmul.f32 %v423, 0.0010283801
        %v464 = vmul.f32 %v424, 0.0010283801
        %v465 = vmul.f32 %v425, 0.0010283801
        %v466 = vmul.f32 %v426, 0.0010283801
        %v467 = vmul.f32 %v427, 0.0010283801
        %v468 = vmul.f32 %v428, 0.0010283801
        %v469 = vmul.f32 %v429, 0.0010283801
        %v470 = vmul.f32 %v430, 0.0010283801
        %v471 = vmul.f32 %v431, 0.0010283801
        %v472 = vmul.f32 %v432, 0.0010283801
        %v473 = vmul.f32 %v433, 0.0010283801
        %v474 = vmul.f32 %v434, 0.0010283801
        %v475 = vld [vmem:[#allocation2 + $0x1] sm:$0xff]
        %v476 = vld [vmem:[#allocation2 + $0x9] sm:$0xff]
        %v477 = vld [vmem:[#allocation2 + $0x21] sm:$0xff]
        %v478 = vld [vmem:[#allocation2 + $0x29] sm:$0xff]
        %v479 = vld [vmem:[#allocation2 + $0x41] sm:$0xff]
        %v480 = vld [vmem:[#allocation2 + $0x49] sm:$0xff]
        %v481 = vld [vmem:[#allocation2 + $0x61] sm:$0xff]
        %v482 = vld [vmem:[#allocation2 + $0x69] sm:$0xff]
        %v483 = vld [vmem:[#allocation2 + $0x81] sm:$0xff]
        %v484 = vld [vmem:[#allocation2 + $0x89] sm:$0xff]
        %v485 = vld [vmem:[#allocation2 + $0xa1] sm:$0xff]
        %v486 = vld [vmem:[#allocation2 + $0xa9] sm:$0xff]
        %v487 = vld [vmem:[#allocation2 + $0xc1] sm:$0xff]
        %v488 = vld [vmem:[#allocation2 + $0xc9] sm:$0xff]
        %v489 = vld [vmem:[#allocation2 + $0xe1] sm:$0xff]
        %v490 = vld [vmem:[#allocation2 + $0xe9] sm:$0xff]
        %v491 = vld [vmem:[#allocation2 + $0x101] sm:$0xff]
        %v492 = vld [vmem:[#allocation2 + $0x109] sm:$0xff]
        %v493 = vld [vmem:[#allocation2 + $0x121] sm:$0xff]
        %v494 = vld [vmem:[#allocation2 + $0x129] sm:$0xff]
        %v495 = vld [vmem:[#allocation2 + $0x141] sm:$0xff]
        %v496 = vld [vmem:[#allocation2 + $0x149] sm:$0xff]
        %v497 = vld [vmem:[#allocation2 + $0x161] sm:$0xff]
        %v498 = vld [vmem:[#allocation2 + $0x169] sm:$0xff]
        %v499 = vld [vmem:[#allocation2 + $0x181] sm:$0xff]
        %v500 = vld [vmem:[#allocation2 + $0x189] sm:$0xff]
        %v501 = vld [vmem:[#allocation2 + $0x1a1] sm:$0xff]
        %v502 = vld [vmem:[#allocation2 + $0x1a9] sm:$0xff]
        %v503 = vld [vmem:[#allocation2 + $0x1c1] sm:$0xff]
        %v504 = vld [vmem:[#allocation2 + $0x1c9] sm:$0xff]
        %v505 = vld [vmem:[#allocation2 + $0x1e1] sm:$0xff]
        %v506 = vld [vmem:[#allocation2 + $0x1e9] sm:$0xff]
        %v507 = vld [vmem:[#allocation2 + $0x201] sm:$0xff]
        %v508 = vld [vmem:[#allocation2 + $0x209] sm:$0xff]
        %v509 = vld [vmem:[#allocation2 + $0x221] sm:$0xff]
        %v510 = vld [vmem:[#allocation2 + $0x229] sm:$0xff]
        %v511 = vld [vmem:[#allocation2 + $0x241] sm:$0xff]
        %v512 = vld [vmem:[#allocation2 + $0x249] sm:$0xff]
        %v513 = vld [vmem:[#allocation2 + $0x261] sm:$0xff]
        %v514 = vld [vmem:[#allocation2 + $0x269] sm:$0xff]
        %v515 = vmul.f32 %v475, 0.007598758
        %v516 = vmul.f32 %v476, 0.007598758
        %v517 = vmul.f32 %v477, 0.007598758
        %v518 = vmul.f32 %v478, 0.007598758
        %v519 = vmul.f32 %v479, 0.007598758
        %v520 = vmul.f32 %v480, 0.007598758
        %v521 = vmul.f32 %v481, 0.007598758
        %v522 = vmul.f32 %v482, 0.007598758
        %v523 = vmul.f32 %v483, 0.007598758
        %v524 = vmul.f32 %v484, 0.007598758
        %v525 = vmul.f32 %v485, 0.007598758
        %v526 = vmul.f32 %v486, 0.007598758
        %v527 = vmul.f32 %v487, 0.007598758
        %v528 = vmul.f32 %v488, 0.007598758
        %v529 = vmul.f32 %v489, 0.007598758
        %v530 = vmul.f32 %v490, 0.007598758
        %v531 = vmul.f32 %v491, 0.007598758
        %v532 = vmul.f32 %v492, 0.007598758
        %v533 = vmul.f32 %v493, 0.007598758
        %v534 = vmul.f32 %v494, 0.007598758
        %v535 = vmul.f32 %v495, 0.007598758
        %v536 = vmul.f32 %v496, 0.007598758
        %v537 = vmul.f32 %v497, 0.007598758
        %v538 = vmul.f32 %v498, 0.007598758
        %v539 = vmul.f32 %v499, 0.007598758
        %v540 = vmul.f32 %v500, 0.007598758
        %v541 = vmul.f32 %v501, 0.007598758
        %v542 = vmul.f32 %v502, 0.007598758
        %v543 = vmul.f32 %v503, 0.007598758
        %v544 = vmul.f32 %v504, 0.007598758
        %v545 = vmul.f32 %v505, 0.007598758
        %v546 = vmul.f32 %v506, 0.007598758
        %v547 = vmul.f32 %v507, 0.007598758
        %v548 = vmul.f32 %v508, 0.007598758
        %v549 = vmul.f32 %v509, 0.007598758
        %v550 = vmul.f32 %v510, 0.007598758
        %v551 = vmul.f32 %v511, 0.007598758
        %v552 = vmul.f32 %v512, 0.007598758
        %v553 = vmul.f32 %v513, 0.007598758
        %v554 = vmul.f32 %v514, 0.007598758
        %v555 = vadd.f32 %v435, %v515
        %v556 = vadd.f32 %v436, %v516
        %v557 = vadd.f32 %v437, %v517
        %v558 = vadd.f32 %v438, %v518
        %v559 = vadd.f32 %v439, %v519
        %v560 = vadd.f32 %v440, %v520
        %v561 = vadd.f32 %v441, %v521
        %v562 = vadd.f32 %v442, %v522
        %v563 = vadd.f32 %v443, %v523
        %v564 = vadd.f32 %v444, %v524
        %v565 = vadd.f32 %v445, %v525
        %v566 = vadd.f32 %v446, %v526
        %v567 = vadd.f32 %v447, %v527
        %v568 = vadd.f32 %v448, %v528
        %v569 = vadd.f32 %v449, %v529
        %v570 = vadd.f32 %v450, %v530
        %v571 = vadd.f32 %v451, %v531
        %v572 = vadd.f32 %v452, %v532
        %v573 = vadd.f32 %v453, %v533
        %v574 = vadd.f32 %v454, %v534
        %v575 = vadd.f32 %v455, %v535
        %v576 = vadd.f32 %v456, %v536
        %v577 = vadd.f32 %v457, %v537
        %v578 = vadd.f32 %v458, %v538
        %v579 = vadd.f32 %v459, %v539
        %v580 = vadd.f32 %v460, %v540
        %v581 = vadd.f32 %v461, %v541
        %v582 = vadd.f32 %v462, %v542
        %v583 = vadd.f32 %v463, %v543
        %v584 = vadd.f32 %v464, %v544
        %v585 = vadd.f32 %v465, %v545
        %v586 = vadd.f32 %v466, %v546
        %v587 = vadd.f32 %v467, %v547
        %v588 = vadd.f32 %v468, %v548
        %v589 = vadd.f32 %v469, %v549
        %v590 = vadd.f32 %v470, %v550
        %v591 = vadd.f32 %v471, %v551
        %v592 = vadd.f32 %v472, %v552
        %v593 = vadd.f32 %v473, %v553
        %v594 = vadd.f32 %v474, %v554
        %v595 = vld [vmem:[#allocation2 + $0x2] sm:$0xff]
        %v596 = vld [vmem:[#allocation2 + $0xa] sm:$0xff]
        %v597 = vld [vmem:[#allocation2 + $0x22] sm:$0xff]
        %v598 = vld [vmem:[#allocation2 + $0x2a] sm:$0xff]
        %v599 = vld [vmem:[#allocation2 + $0x42] sm:$0xff]
        %v600 = vld [vmem:[#allocation2 + $0x4a] sm:$0xff]
        %v601 = vld [vmem:[#allocation2 + $0x62] sm:$0xff]
        %v602 = vld [vmem:[#allocation2 + $0x6a] sm:$0xff]
        %v603 = vld [vmem:[#allocation2 + $0x82] sm:$0xff]
        %v604 = vld [vmem:[#allocation2 + $0x8a] sm:$0xff]
        %v605 = vld [vmem:[#allocation2 + $0xa2] sm:$0xff]
        %v606 = vld [vmem:[#allocation2 + $0xaa] sm:$0xff]
        %v607 = vld [vmem:[#allocation2 + $0xc2] sm:$0xff]
        %v608 = vld [vmem:[#allocation2 + $0xca] sm:$0xff]
        %v609 = vld [vmem:[#allocation2 + $0xe2] sm:$0xff]
        %v610 = vld [vmem:[#allocation2 + $0xea] sm:$0xff]
        %v611 = vld [vmem:[#allocation2 + $0x102] sm:$0xff]
        %v612 = vld [vmem:[#allocation2 + $0x10a] sm:$0xff]
        %v613 = vld [vmem:[#allocation2 + $0x122] sm:$0xff]
        %v614 = vld [vmem:[#allocation2 + $0x12a] sm:$0xff]
        %v615 = vld [vmem:[#allocation2 + $0x142] sm:$0xff]
        %v616 = vld [vmem:[#allocation2 + $0x14a] sm:$0xff]
        %v617 = vld [vmem:[#allocation2 + $0x162] sm:$0xff]
        %v618 = vld [vmem:[#allocation2 + $0x16a] sm:$0xff]
        %v619 = vld [vmem:[#allocation2 + $0x182] sm:$0xff]
        %v620 = vld [vmem:[#allocation2 + $0x18a] sm:$0xff]
        %v621 = vld [vmem:[#allocation2 + $0x1a2] sm:$0xff]
        %v622 = vld [vmem:[#allocation2 + $0x1aa] sm:$0xff]
        %v623 = vld [vmem:[#allocation2 + $0x1c2] sm:$0xff]
        %v624 = vld [vmem:[#allocation2 + $0x1ca] sm:$0xff]
        %v625 = vld [vmem:[#allocation2 + $0x1e2] sm:$0xff]
        %v626 = vld [vmem:[#allocation2 + $0x1ea] sm:$0xff]
        %v627 = vld [vmem:[#allocation2 + $0x202] sm:$0xff]
        %v628 = vld [vmem:[#allocation2 + $0x20a] sm:$0xff]
        %v629 = vld [vmem:[#allocation2 + $0x222] sm:$0xff]
        %v630 = vld [vmem:[#allocation2 + $0x22a] sm:$0xff]
        %v631 = vld [vmem:[#allocation2 + $0x242] sm:$0xff]
        %v632 = vld [vmem:[#allocation2 + $0x24a] sm:$0xff]
        %v633 = vld [vmem:[#allocation2 + $0x262] sm:$0xff]
        %v634 = vld [vmem:[#allocation2 + $0x26a] sm:$0xff]
        %v635 = vmul.f32 %v595, 0.036000773
        %v636 = vmul.f32 %v596, 0.036000773
        %v637 = vmul.f32 %v597, 0.036000773
        %v638 = vmul.f32 %v598, 0.036000773
        %v639 = vmul.f32 %v599, 0.036000773
        %v640 = vmul.f32 %v600, 0.036000773
        %v641 = vmul.f32 %v601, 0.036000773
        %v642 = vmul.f32 %v602, 0.036000773
        %v643 = vmul.f32 %v603, 0.036000773
        %v644 = vmul.f32 %v604, 0.036000773
        %v645 = vmul.f32 %v605, 0.036000773
        %v646 = vmul.f32 %v606, 0.036000773
        %v647 = vmul.f32 %v607, 0.036000773
        %v648 = vmul.f32 %v608, 0.036000773
        %v649 = vmul.f32 %v609, 0.036000773
        %v650 = vmul.f32 %v610, 0.036000773
        %v651 = vmul.f32 %v611, 0.036000773
        %v652 = vmul.f32 %v612, 0.036000773
        %v653 = vmul.f32 %v613, 0.036000773
        %v654 = vmul.f32 %v614, 0.036000773
        %v655 = vmul.f32 %v615, 0.036000773
        %v656 = vmul.f32 %v616, 0.036000773
        %v657 = vmul.f32 %v617, 0.036000773
        %v658 = vmul.f32 %v618, 0.036000773
        %v659 = vmul.f32 %v619, 0.036000773
        %v660 = vmul.f32 %v620, 0.036000773
        %v661 = vmul.f32 %v621, 0.036000773
        %v662 = vmul.f32 %v622, 0.036000773
        %v663 = vmul.f32 %v623, 0.036000773
        %v664 = vmul.f32 %v624, 0.036000773
        %v665 = vmul.f32 %v625, 0.036000773
        %v666 = vmul.f32 %v626, 0.036000773
        %v667 = vmul.f32 %v627, 0.036000773
        %v668 = vmul.f32 %v628, 0.036000773
        %v669 = vmul.f32 %v629, 0.036000773
        %v670 = vmul.f32 %v630, 0.036000773
        %v671 = vmul.f32 %v631, 0.036000773
        %v672 = vmul.f32 %v632, 0.036000773
        %v673 = vmul.f32 %v633, 0.036000773
        %v674 = vmul.f32 %v634, 0.036000773
        %v675 = vadd.f32 %v555, %v635
        %v676 = vadd.f32 %v556, %v636
        %v677 = vadd.f32 %v557, %v637
        %v678 = vadd.f32 %v558, %v638
        %v679 = vadd.f32 %v559, %v639
        %v680 = vadd.f32 %v560, %v640
        %v681 = vadd.f32 %v561, %v641
        %v682 = vadd.f32 %v562, %v642
        %v683 = vadd.f32 %v563, %v643
        %v684 = vadd.f32 %v564, %v644
        %v685 = vadd.f32 %v565, %v645
        %v686 = vadd.f32 %v566, %v646
        %v687 = vadd.f32 %v567, %v647
        %v688 = vadd.f32 %v568, %v648
        %v689 = vadd.f32 %v569, %v649
        %v690 = vadd.f32 %v570, %v650
        %v691 = vadd.f32 %v571, %v651
        %v692 = vadd.f32 %v572, %v652
        %v693 = vadd.f32 %v573, %v653
        %v694 = vadd.f32 %v574, %v654
        %v695 = vadd.f32 %v575, %v655
        %v696 = vadd.f32 %v576, %v656
        %v697 = vadd.f32 %v577, %v657
        %v698 = vadd.f32 %v578, %v658
        %v699 = vadd.f32 %v579, %v659
        %v700 = vadd.f32 %v580, %v660
        %v701 = vadd.f32 %v581, %v661
        %v702 = vadd.f32 %v582, %v662
        %v703 = vadd.f32 %v583, %v663
        %v704 = vadd.f32 %v584, %v664
        %v705 = vadd.f32 %v585, %v665
        %v706 = vadd.f32 %v586, %v666
        %v707 = vadd.f32 %v587, %v667
        %v708 = vadd.f32 %v588, %v668
        %v709 = vadd.f32 %v589, %v669
        %v710 = vadd.f32 %v590, %v670
        %v711 = vadd.f32 %v591, %v671
        %v712 = vadd.f32 %v592, %v672
        %v713 = vadd.f32 %v593, %v673
        %v714 = vadd.f32 %v594, %v674
        %v715 = vld [vmem:[#allocation2 + $0x3] sm:$0xff]
        %v716 = vld [vmem:[#allocation2 + $0xb] sm:$0xff]
        %v717 = vld [vmem:[#allocation2 + $0x23] sm:$0xff]
        %v718 = vld [vmem:[#allocation2 + $0x2b] sm:$0xff]
        %v719 = vld [vmem:[#allocation2 + $0x43] sm:$0xff]
        %v720 = vld [vmem:[#allocation2 + $0x4b] sm:$0xff]
        %v721 = vld [vmem:[#allocation2 + $0x63] sm:$0xff]
        %v722 = vld [vmem:[#allocation2 + $0x6b] sm:$0xff]
        %v723 = vld [vmem:[#allocation2 + $0x83] sm:$0xff]
        %v724 = vld [vmem:[#allocation2 + $0x8b] sm:$0xff]
        %v725 = vld [vmem:[#allocation2 + $0xa3] sm:$0xff]
        %v726 = vld [vmem:[#allocation2 + $0xab] sm:$0xff]
        %v727 = vld [vmem:[#allocation2 + $0xc3] sm:$0xff]
        %v728 = vld [vmem:[#allocation2 + $0xcb] sm:$0xff]
        %v729 = vld [vmem:[#allocation2 + $0xe3] sm:$0xff]
        %v730 = vld [vmem:[#allocation2 + $0xeb] sm:$0xff]
        %v731 = vld [vmem:[#allocation2 + $0x103] sm:$0xff]
        %v732 = vld [vmem:[#allocation2 + $0x10b] sm:$0xff]
        %v733 = vld [vmem:[#allocation2 + $0x123] sm:$0xff]
        %v734 = vld [vmem:[#allocation2 + $0x12b] sm:$0xff]
        %v735 = vld [vmem:[#allocation2 + $0x143] sm:$0xff]
        %v736 = vld [vmem:[#allocation2 + $0x14b] sm:$0xff]
        %v737 = vld [vmem:[#allocation2 + $0x163] sm:$0xff]
        %v738 = vld [vmem:[#allocation2 + $0x16b] sm:$0xff]
        %v739 = vld [vmem:[#allocation2 + $0x183] sm:$0xff]
        %v740 = vld [vmem:[#allocation2 + $0x18b] sm:$0xff]
        %v741 = vld [vmem:[#allocation2 + $0x1a3] sm:$0xff]
        %v742 = vld [vmem:[#allocation2 + $0x1ab] sm:$0xff]
        %v743 = vld [vmem:[#allocation2 + $0x1c3] sm:$0xff]
        %v744 = vld [vmem:[#allocation2 + $0x1cb] sm:$0xff]
        %v745 = vld [vmem:[#allocation2 + $0x1e3] sm:$0xff]
        %v746 = vld [vmem:[#allocation2 + $0x1eb] sm:$0xff]
        %v747 = vld [vmem:[#allocation2 + $0x203] sm:$0xff]
        %v748 = vld [vmem:[#allocation2 + $0x20b] sm:$0xff]
        %v749 = vld [vmem:[#allocation2 + $0x223] sm:$0xff]
        %v750 = vld [vmem:[#allocation2 + $0x22b] sm:$0xff]
        %v751 = vld [vmem:[#allocation2 + $0x243] sm:$0xff]
        %v752 = vld [vmem:[#allocation2 + $0x24b] sm:$0xff]
        %v753 = vld [vmem:[#allocation2 + $0x263] sm:$0xff]
        %v754 = vld [vmem:[#allocation2 + $0x26b] sm:$0xff]
        %v755 = vmul.f32 %v715, 0.10936069
        %v756 = vmul.f32 %v716, 0.10936069
        %v757 = vmul.f32 %v717, 0.10936069
        %v758 = vmul.f32 %v718, 0.10936069
        %v759 = vmul.f32 %v719, 0.10936069
        %v760 = vmul.f32 %v720, 0.10936069
        %v761 = vmul.f32 %v721, 0.10936069
        %v762 = vmul.f32 %v722, 0.10936069
        %v763 = vmul.f32 %v723, 0.10936069
        %v764 = vmul.f32 %v724, 0.10936069
        %v765 = vmul.f32 %v725, 0.10936069
        %v766 = vmul.f32 %v726, 0.10936069
        %v767 = vmul.f32 %v727, 0.10936069
        %v768 = vmul.f32 %v728, 0.10936069
        %v769 = vmul.f32 %v729, 0.10936069
        %v770 = vmul.f32 %v730, 0.10936069
        %v771 = vmul.f32 %v731, 0.10936069
        %v772 = vmul.f32 %v732, 0.10936069
        %v773 = vmul.f32 %v733, 0.10936069
        %v774 = vmul.f32 %v734, 0.10936069
        %v775 = vmul.f32 %v735, 0.10936069
        %v776 = vmul.f32 %v736, 0.10936069
        %v777 = vmul.f32 %v737, 0.10936069
        %v778 = vmul.f32 %v738, 0.10936069
        %v779 = vmul.f32 %v739, 0.10936069
        %v780 = vmul.f32 %v740, 0.10936069
        %v781 = vmul.f32 %v741, 0.10936069
        %v782 = vmul.f32 %v742, 0.10936069
        %v783 = vmul.f32 %v743, 0.10936069
        %v784 = vmul.f32 %v744, 0.10936069
        %v785 = vmul.f32 %v745, 0.10936069
        %v786 = vmul.f32 %v746, 0.10936069
        %v787 = vmul.f32 %v747, 0.10936069
        %v788 = vmul.f32 %v748, 0.10936069
        %v789 = vmul.f32 %v749, 0.10936069
        %v790 = vmul.f32 %v750, 0.10936069
        %v791 = vmul.f32 %v751, 0.10936069
        %v792 = vmul.f32 %v752, 0.10936069
        %v793 = vmul.f32 %v753, 0.10936069
        %v794 = vmul.f32 %v754, 0.10936069
        %v795 = vadd.f32 %v675, %v755
        %v796 = vadd.f32 %v676, %v756
        %v797 = vadd.f32 %v677, %v757
        %v798 = vadd.f32 %v678, %v758
        %v799 = vadd.f32 %v679, %v759
        %v800 = vadd.f32 %v680, %v760
        %v801 = vadd.f32 %v681, %v761
        %v802 = vadd.f32 %v682, %v762
        %v803 = vadd.f32 %v683, %v763
        %v804 = vadd.f32 %v684, %v764
        %v805 = vadd.f32 %v685, %v765
        %v806 = vadd.f32 %v686, %v766
        %v807 = vadd.f32 %v687, %v767
        %v808 = vadd.f32 %v688, %v768
        %v809 = vadd.f32 %v689, %v769
        %v810 = vadd.f32 %v690, %v770
        %v811 = vadd.f32 %v691, %v771
        %v812 = vadd.f32 %v692, %v772
        %v813 = vadd.f32 %v693, %v773
        %v814 = vadd.f32 %v694, %v774
        %v815 = vadd.f32 %v695, %v775
        %v816 = vadd.f32 %v696, %v776
        %v817 = vadd.f32 %v697, %v777
        %v818 = vadd.f32 %v698, %v778
        %v819 = vadd.f32 %v699, %v779
        %v820 = vadd.f32 %v700, %v780
        %v821 = vadd.f32 %v701, %v781
        %v822 = vadd.f32 %v702, %v782
        %v823 = vadd.f32 %v703, %v783
        %v824 = vadd.f32 %v704, %v784
        %v825 = vadd.f32 %v705, %v785
        %v826 = vadd.f32 %v706, %v786
        %v827 = vadd.f32 %v707, %v787
        %v828 = vadd.f32 %v708, %v788
        %v829 = vadd.f32 %v709, %v789
        %v830 = vadd.f32 %v710, %v790
        %v831 = vadd.f32 %v711, %v791
        %v832 = vadd.f32 %v712, %v792
        %v833 = vadd.f32 %v713, %v793
        %v834 = vadd.f32 %v714, %v794
        %v835 = vld [vmem:[#allocation2 + $0x4] sm:$0xff]
        %v836 = vld [vmem:[#allocation2 + $0xc] sm:$0xff]
        %v837 = vld [vmem:[#allocation2 + $0x24] sm:$0xff]
        %v838 = vld [vmem:[#allocation2 + $0x2c] sm:$0xff]
        %v839 = vld [vmem:[#allocation2 + $0x44] sm:$0xff]
        %v840 = vld [vmem:[#allocation2 + $0x4c] sm:$0xff]
        %v841 = vld [vmem:[#allocation2 + $0x64] sm:$0xff]
        %v842 = vld [vmem:[#allocation2 + $0x6c] sm:$0xff]
        %v843 = vld [vmem:[#allocation2 + $0x84] sm:$0xff]
        %v844 = vld [vmem:[#allocation2 + $0x8c] sm:$0xff]
        %v845 = vld [vmem:[#allocation2 + $0xa4] sm:$0xff]
        %v846 = vld [vmem:[#allocation2 + $0xac] sm:$0xff]
        %v847 = vld [vmem:[#allocation2 + $0xc4] sm:$0xff]
        %v848 = vld [vmem:[#allocation2 + $0xcc] sm:$0xff]
        %v849 = vld [vmem:[#allocation2 + $0xe4] sm:$0xff]
        %v850 = vld [vmem:[#allocation2 + $0xec] sm:$0xff]
        %v851 = vld [vmem:[#allocation2 + $0x104] sm:$0xff]
        %v852 = vld [vmem:[#allocation2 + $0x10c] sm:$0xff]
        %v853 = vld [vmem:[#allocation2 + $0x124] sm:$0xff]
        %v854 = vld [vmem:[#allocation2 + $0x12c] sm:$0xff]
        %v855 = vld [vmem:[#allocation2 + $0x144] sm:$0xff]
        %v856 = vld [vmem:[#allocation2 + $0x14c] sm:$0xff]
        %v857 = vld [vmem:[#allocation2 + $0x164] sm:$0xff]
        %v858 = vld [vmem:[#allocation2 + $0x16c] sm:$0xff]
        %v859 = vld [vmem:[#allocation2 + $0x184] sm:$0xff]
        %v860 = vld [vmem:[#allocation2 + $0x18c] sm:$0xff]
        %v861 = vld [vmem:[#allocation2 + $0x1a4] sm:$0xff]
        %v862 = vld [vmem:[#allocation2 + $0x1ac] sm:$0xff]
        %v863 = vld [vmem:[#allocation2 + $0x1c4] sm:$0xff]
        %v864 = vld [vmem:[#allocation2 + $0x1cc] sm:$0xff]
        %v865 = vld [vmem:[#allocation2 + $0x1e4] sm:$0xff]
        %v866 = vld [vmem:[#allocation2 + $0x1ec] sm:$0xff]
        %v867 = vld [vmem:[#allocation2 + $0x204] sm:$0xff]
        %v868 = vld [vmem:[#allocation2 + $0x20c] sm:$0xff]
        %v869 = vld [vmem:[#allocation2 + $0x224] sm:$0xff]
        %v870 = vld [vmem:[#allocation2 + $0x22c] sm:$0xff]
        %v871 = vld [vmem:[#allocation2 + $0x244] sm:$0xff]
        %v872 = vld [vmem:[#allocation2 + $0x24c] sm:$0xff]
        %v873 = vld [vmem:[#allocation2 + $0x264] sm:$0xff]
        %v874 = vld [vmem:[#allocation2 + $0x26c] sm:$0xff]
        %v875 = vmul.f32 %v835, 0.21300554
        %v876 = vmul.f32 %v836, 0.21300554
        %v877 = vmul.f32 %v837, 0.21300554
        %v878 = vmul.f32 %v838, 0.21300554
        %v879 = vmul.f32 %v839, 0.21300554
        %v880 = vmul.f32 %v840, 0.21300554
        %v881 = vmul.f32 %v841, 0.21300554
        %v882 = vmul.f32 %v842, 0.21300554
        %v883 = vmul.f32 %v843, 0.21300554
        %v884 = vmul.f32 %v844, 0.21300554
        %v885 = vmul.f32 %v845, 0.21300554
        %v886 = vmul.f32 %v846, 0.21300554
        %v887 = vmul.f32 %v847, 0.21300554
        %v888 = vmul.f32 %v848, 0.21300554
        %v889 = vmul.f32 %v849, 0.21300554
        %v890 = vmul.f32 %v850, 0.21300554
        %v891 = vmul.f32 %v851, 0.21300554
        %v892 = vmul.f32 %v852, 0.21300554
        %v893 = vmul.f32 %v853, 0.21300554
        %v894 = vmul.f32 %v854, 0.21300554
        %v895 = vmul.f32 %v855, 0.21300554
        %v896 = vmul.f32 %v856, 0.21300554
        %v897 = vmul.f32 %v857, 0.21300554
        %v898 = vmul.f32 %v858, 0.21300554
        %v899 = vmul.f32 %v859, 0.21300554
        %v900 = vmul.f32 %v860, 0.21300554
        %v901 = vmul.f32 %v861, 0.21300554
        %v902 = vmul.f32 %v862, 0.21300554
        %v903 = vmul.f32 %v863, 0.21300554
        %v904 = vmul.f32 %v864, 0.21300554
        %v905 = vmul.f32 %v865, 0.21300554
        %v906 = vmul.f32 %v866, 0.21300554
        %v907 = vmul.f32 %v867, 0.21300554
        %v908 = vmul.f32 %v868, 0.21300554
        %v909 = vmul.f32 %v869, 0.21300554
        %v910 = vmul.f32 %v870, 0.21300554
        %v911 = vmul.f32 %v871, 0.21300554
        %v912 = vmul.f32 %v872, 0.21300554
        %v913 = vmul.f32 %v873, 0.21300554
        %v914 = vmul.f32 %v874, 0.21300554
        %v915 = vadd.f32 %v795, %v875
        %v916 = vadd.f32 %v796, %v876
        %v917 = vadd.f32 %v797, %v877
        %v918 = vadd.f32 %v798, %v878
        %v919 = vadd.f32 %v799, %v879
        %v920 = vadd.f32 %v800, %v880
        %v921 = vadd.f32 %v801, %v881
        %v922 = vadd.f32 %v802, %v882
        %v923 = vadd.f32 %v803, %v883
        %v924 = vadd.f32 %v804, %v884
        %v925 = vadd.f32 %v805, %v885
        %v926 = vadd.f32 %v806, %v886
        %v927 = vadd.f32 %v807, %v887
        %v928 = vadd.f32 %v808, %v888
        %v929 = vadd.f32 %v809, %v889
        %v930 = vadd.f32 %v810, %v890
        %v931 = vadd.f32 %v811, %v891
        %v932 = vadd.f32 %v812, %v892
        %v933 = vadd.f32 %v813, %v893
        %v934 = vadd.f32 %v814, %v894
        %v935 = vadd.f32 %v815, %v895
        %v936 = vadd.f32 %v816, %v896
        %v937 = vadd.f32 %v817, %v897
        %v938 = vadd.f32 %v818, %v898
        %v939 = vadd.f32 %v819, %v899
        %v940 = vadd.f32 %v820, %v900
        %v941 = vadd.f32 %v821, %v901
        %v942 = vadd.f32 %v822, %v902
        %v943 = vadd.f32 %v823, %v903
        %v944 = vadd.f32 %v824, %v904
        %v945 = vadd.f32 %v825, %v905
        %v946 = vadd.f32 %v826, %v906
        %v947 = vadd.f32 %v827, %v907
        %v948 = vadd.f32 %v828, %v908
        %v949 = vadd.f32 %v829, %v909
        %v950 = vadd.f32 %v830, %v910
        %v951 = vadd.f32 %v831, %v911
        %v952 = vadd.f32 %v832, %v912
        %v953 = vadd.f32 %v833, %v913
        %v954 = vadd.f32 %v834, %v914
        %v955 = vld [vmem:[#allocation2 + $0x5] sm:$0xff]
        %v956 = vld [vmem:[#allocation2 + $0xd] sm:$0xff]
        %v957 = vld [vmem:[#allocation2 + $0x25] sm:$0xff]
        %v958 = vld [vmem:[#allocation2 + $0x2d] sm:$0xff]
        %v959 = vld [vmem:[#allocation2 + $0x45] sm:$0xff]
        %v960 = vld [vmem:[#allocation2 + $0x4d] sm:$0xff]
        %v961 = vld [vmem:[#allocation2 + $0x65] sm:$0xff]
        %v962 = vld [vmem:[#allocation2 + $0x6d] sm:$0xff]
        %v963 = vld [vmem:[#allocation2 + $0x85] sm:$0xff]
        %v964 = vld [vmem:[#allocation2 + $0x8d] sm:$0xff]
        %v965 = vld [vmem:[#allocation2 + $0xa5] sm:$0xff]
        %v966 = vld [vmem:[#allocation2 + $0xad] sm:$0xff]
        %v967 = vld [vmem:[#allocation2 + $0xc5] sm:$0xff]
        %v968 = vld [vmem:[#allocation2 + $0xcd] sm:$0xff]
        %v969 = vld [vmem:[#allocation2 + $0xe5] sm:$0xff]
        %v970 = vld [vmem:[#allocation2 + $0xed] sm:$0xff]
        %v971 = vld [vmem:[#allocation2 + $0x105] sm:$0xff]
        %v972 = vld [vmem:[#allocation2 + $0x10d] sm:$0xff]
        %v973 = vld [vmem:[#allocation2 + $0x125] sm:$0xff]
        %v974 = vld [vmem:[#allocation2 + $0x12d] sm:$0xff]
        %v975 = vld [vmem:[#allocation2 + $0x145] sm:$0xff]
        %v976 = vld [vmem:[#allocation2 + $0x14d] sm:$0xff]
        %v977 = vld [vmem:[#allocation2 + $0x165] sm:$0xff]
        %v978 = vld [vmem:[#allocation2 + $0x16d] sm:$0xff]
        %v979 = vld [vmem:[#allocation2 + $0x185] sm:$0xff]
        %v980 = vld [vmem:[#allocation2 + $0x18d] sm:$0xff]
        %v981 = vld [vmem:[#allocation2 + $0x1a5] sm:$0xff]
        %v982 = vld [vmem:[#allocation2 + $0x1ad] sm:$0xff]
        %v983 = vld [vmem:[#allocation2 + $0x1c5] sm:$0xff]
        %v984 = vld [vmem:[#allocation2 + $0x1cd] sm:$0xff]
        %v985 = vld [vmem:[#allocation2 + $0x1e5] sm:$0xff]
        %v986 = vld [vmem:[#allocation2 + $0x1ed] sm:$0xff]
        %v987 = vld [vmem:[#allocation2 + $0x205] sm:$0xff]
        %v988 = vld [vmem:[#allocation2 + $0x20d] sm:$0xff]
        %v989 = vld [vmem:[#allocation2 + $0x225] sm:$0xff]
        %v990 = vld [vmem:[#allocation2 + $0x22d] sm:$0xff]
        %v991 = vld [vmem:[#allocation2 + $0x245] sm:$0xff]
        %v992 = vld [vmem:[#allocation2 + $0x24d] sm:$0xff]
        %v993 = vld [vmem:[#allocation2 + $0x265] sm:$0xff]
        %v994 = vld [vmem:[#allocation2 + $0x26d] sm:$0xff]
        %v995 = vmul.f32 %v955, 0.26601171
        %v996 = vmul.f32 %v956, 0.26601171
        %v997 = vmul.f32 %v957, 0.26601171
        %v998 = vmul.f32 %v958, 0.26601171
        %v999 = vmul.f32 %v959, 0.26601171
        %v1000 = vmul.f32 %v960, 0.26601171
        %v1001 = vmul.f32 %v961, 0.26601171
        %v1002 = vmul.f32 %v962, 0.26601171
        %v1003 = vmul.f32 %v963, 0.26601171
        %v1004 = vmul.f32 %v964, 0.26601171
        %v1005 = vmul.f32 %v965, 0.26601171
        %v1006 = vmul.f32 %v966, 0.26601171
        %v1007 = vmul.f32 %v967, 0.26601171
        %v1008 = vmul.f32 %v968, 0.26601171
        %v1009 = vmul.f32 %v969, 0.26601171
        %v1010 = vmul.f32 %v970, 0.26601171
        %v1011 = vmul.f32 %v971, 0.26601171
        %v1012 = vmul.f32 %v972, 0.26601171
        %v1013 = vmul.f32 %v973, 0.26601171
        %v1014 = vmul.f32 %v974, 0.26601171
        %v1015 = vmul.f32 %v975, 0.26601171
        %v1016 = vmul.f32 %v976, 0.26601171
        %v1017 = vmul.f32 %v977, 0.26601171
        %v1018 = vmul.f32 %v978, 0.26601171
        %v1019 = vmul.f32 %v979, 0.26601171
        %v1020 = vmul.f32 %v980, 0.26601171
        %v1021 = vmul.f32 %v981, 0.26601171
        %v1022 = vmul.f32 %v982, 0.26601171
        %v1023 = vmul.f32 %v983, 0.26601171
        %v1024 = vmul.f32 %v984, 0.26601171
        %v1025 = vmul.f32 %v985, 0.26601171
        %v1026 = vmul.f32 %v986, 0.26601171
        %v1027 = vmul.f32 %v987, 0.26601171
        %v1028 = vmul.f32 %v988, 0.26601171
        %v1029 = vmul.f32 %v989, 0.26601171
        %v1030 = vmul.f32 %v990, 0.26601171
        %v1031 = vmul.f32 %v991, 0.26601171
        %v1032 = vmul.f32 %v992, 0.26601171
        %v1033 = vmul.f32 %v993, 0.26601171
        %v1034 = vmul.f32 %v994, 0.26601171
        %v1035 = vadd.f32 %v915, %v995
        %v1036 = vadd.f32 %v916, %v996
        %v1037 = vadd.f32 %v917, %v997
        %v1038 = vadd.f32 %v918, %v998
        %v1039 = vadd.f32 %v919, %v999
        %v1040 = vadd.f32 %v920, %v1000
        %v1041 = vadd.f32 %v921, %v1001
        %v1042 = vadd.f32 %v922, %v1002
        %v1043 = vadd.f32 %v923, %v1003
        %v1044 = vadd.f32 %v924, %v1004
        %v1045 = vadd.f32 %v925, %v1005
        %v1046 = vadd.f32 %v926, %v1006
        %v1047 = vadd.f32 %v927, %v1007
        %v1048 = vadd.f32 %v928, %v1008
        %v1049 = vadd.f32 %v929, %v1009
        %v1050 = vadd.f32 %v930, %v1010
        %v1051 = vadd.f32 %v931, %v1011
        %v1052 = vadd.f32 %v932, %v1012
        %v1053 = vadd.f32 %v933, %v1013
        %v1054 = vadd.f32 %v934, %v1014
        %v1055 = vadd.f32 %v935, %v1015
        %v1056 = vadd.f32 %v936, %v1016
        %v1057 = vadd.f32 %v937, %v1017
        %v1058 = vadd.f32 %v938, %v1018
        %v1059 = vadd.f32 %v939, %v1019
        %v1060 = vadd.f32 %v940, %v1020
        %v1061 = vadd.f32 %v941, %v1021
        %v1062 = vadd.f32 %v942, %v1022
        %v1063 = vadd.f32 %v943, %v1023
        %v1064 = vadd.f32 %v944, %v1024
        %v1065 = vadd.f32 %v945, %v1025
        %v1066 = vadd.f32 %v946, %v1026
        %v1067 = vadd.f32 %v947, %v1027
        %v1068 = vadd.f32 %v948, %v1028
        %v1069 = vadd.f32 %v949, %v1029
        %v1070 = vadd.f32 %v950, %v1030
        %v1071 = vadd.f32 %v951, %v1031
        %v1072 = vadd.f32 %v952, %v1032
        %v1073 = vadd.f32 %v953, %v1033
        %v1074 = vadd.f32 %v954, %v1034
        %v1075 = vld [vmem:[#allocation2 + $0x6] sm:$0xff]
        %v1076 = vld [vmem:[#allocation2 + $0xe] sm:$0xff]
        %v1077 = vld [vmem:[#allocation2 + $0x26] sm:$0xff]
        %v1078 = vld [vmem:[#allocation2 + $0x2e] sm:$0xff]
        %v1079 = vld [vmem:[#allocation2 + $0x46] sm:$0xff]
        %v1080 = vld [vmem:[#allocation2 + $0x4e] sm:$0xff]
        %v1081 = vld [vmem:[#allocation2 + $0x66] sm:$0xff]
        %v1082 = vld [vmem:[#allocation2 + $0x6e] sm:$0xff]
        %v1083 = vld [vmem:[#allocation2 + $0x86] sm:$0xff]
        %v1084 = vld [vmem:[#allocation2 + $0x8e] sm:$0xff]
        %v1085 = vld [vmem:[#allocation2 + $0xa6] sm:$0xff]
        %v1086 = vld [vmem:[#allocation2 + $0xae] sm:$0xff]
        %v1087 = vld [vmem:[#allocation2 + $0xc6] sm:$0xff]
        %v1088 = vld [vmem:[#allocation2 + $0xce] sm:$0xff]
        %v1089 = vld [vmem:[#allocation2 + $0xe6] sm:$0xff]
        %v1090 = vld [vmem:[#allocation2 + $0xee] sm:$0xff]
        %v1091 = vld [vmem:[#allocation2 + $0x106] sm:$0xff]
        %v1092 = vld [vmem:[#allocation2 + $0x10e] sm:$0xff]
        %v1093 = vld [vmem:[#allocation2 + $0x126] sm:$0xff]
        %v1094 = vld [vmem:[#allocation2 + $0x12e] sm:$0xff]
        %v1095 = vld [vmem:[#allocation2 + $0x146] sm:$0xff]
        %v1096 = vld [vmem:[#allocation2 + $0x14e] sm:$0xff]
        %v1097 = vld [vmem:[#allocation2 + $0x166] sm:$0xff]
        %v1098 = vld [vmem:[#allocation2 + $0x16e] sm:$0xff]
        %v1099 = vld [vmem:[#allocation2 + $0x186] sm:$0xff]
        %v1100 = vld [vmem:[#allocation2 + $0x18e] sm:$0xff]
        %v1101 = vld [vmem:[#allocation2 + $0x1a6] sm:$0xff]
        %v1102 = vld [vmem:[#allocation2 + $0x1ae] sm:$0xff]
        %v1103 = vld [vmem:[#allocation2 + $0x1c6] sm:$0xff]
        %v1104 = vld [vmem:[#allocation2 + $0x1ce] sm:$0xff]
        %v1105 = vld [vmem:[#allocation2 + $0x1e6] sm:$0xff]
        %v1106 = vld [vmem:[#allocation2 + $0x1ee] sm:$0xff]
        %v1107 = vld [vmem:[#allocation2 + $0x206] sm:$0xff]
        %v1108 = vld [vmem:[#allocation2 + $0x20e] sm:$0xff]
        %v1109 = vld [vmem:[#allocation2 + $0x226] sm:$0xff]
        %v1110 = vld [vmem:[#allocation2 + $0x22e] sm:$0xff]
        %v1111 = vld [vmem:[#allocation2 + $0x246] sm:$0xff]
        %v1112 = vld [vmem:[#allocation2 + $0x24e] sm:$0xff]
        %v1113 = vld [vmem:[#allocation2 + $0x266] sm:$0xff]
        %v1114 = vld [vmem:[#allocation2 + $0x26e] sm:$0xff]
        %v1115 = vmul.f32 %v1075, 0.21300554
        %v1116 = vmul.f32 %v1076, 0.21300554
        %v1117 = vmul.f32 %v1077, 0.21300554
        %v1118 = vmul.f32 %v1078, 0.21300554
        %v1119 = vmul.f32 %v1079, 0.21300554
        %v1120 = vmul.f32 %v1080, 0.21300554
        %v1121 = vmul.f32 %v1081, 0.21300554
        %v1122 = vmul.f32 %v1082, 0.21300554
        %v1123 = vmul.f32 %v1083, 0.21300554
        %v1124 = vmul.f32 %v1084, 0.21300554
        %v1125 = vmul.f32 %v1085, 0.21300554
        %v1126 = vmul.f32 %v1086, 0.21300554
        %v1127 = vmul.f32 %v1087, 0.21300554
        %v1128 = vmul.f32 %v1088, 0.21300554
        %v1129 = vmul.f32 %v1089, 0.21300554
        %v1130 = vmul.f32 %v1090, 0.21300554
        %v1131 = vmul.f32 %v1091, 0.21300554
        %v1132 = vmul.f32 %v1092, 0.21300554
        %v1133 = vmul.f32 %v1093, 0.21300554
        %v1134 = vmul.f32 %v1094, 0.21300554
        %v1135 = vmul.f32 %v1095, 0.21300554
        %v1136 = vmul.f32 %v1096, 0.21300554
        %v1137 = vmul.f32 %v1097, 0.21300554
        %v1138 = vmul.f32 %v1098, 0.21300554
        %v1139 = vmul.f32 %v1099, 0.21300554
        %v1140 = vmul.f32 %v1100, 0.21300554
        %v1141 = vmul.f32 %v1101, 0.21300554
        %v1142 = vmul.f32 %v1102, 0.21300554
        %v1143 = vmul.f32 %v1103, 0.21300554
        %v1144 = vmul.f32 %v1104, 0.21300554
        %v1145 = vmul.f32 %v1105, 0.21300554
        %v1146 = vmul.f32 %v1106, 0.21300554
        %v1147 = vmul.f32 %v1107, 0.21300554
        %v1148 = vmul.f32 %v1108, 0.21300554
        %v1149 = vmul.f32 %v1109, 0.21300554
        %v1150 = vmul.f32 %v1110, 0.21300554
        %v1151 = vmul.f32 %v1111, 0.21300554
        %v1152 = vmul.f32 %v1112, 0.21300554
        %v1153 = vmul.f32 %v1113, 0.21300554
        %v1154 = vmul.f32 %v1114, 0.21300554
        %v1155 = vadd.f32 %v1035, %v1115
        %v1156 = vadd.f32 %v1036, %v1116
        %v1157 = vadd.f32 %v1037, %v1117
        %v1158 = vadd.f32 %v1038, %v1118
        %v1159 = vadd.f32 %v1039, %v1119
        %v1160 = vadd.f32 %v1040, %v1120
        %v1161 = vadd.f32 %v1041, %v1121
        %v1162 = vadd.f32 %v1042, %v1122
        %v1163 = vadd.f32 %v1043, %v1123
        %v1164 = vadd.f32 %v1044, %v1124
        %v1165 = vadd.f32 %v1045, %v1125
        %v1166 = vadd.f32 %v1046, %v1126
        %v1167 = vadd.f32 %v1047, %v1127
        %v1168 = vadd.f32 %v1048, %v1128
        %v1169 = vadd.f32 %v1049, %v1129
        %v1170 = vadd.f32 %v1050, %v1130
        %v1171 = vadd.f32 %v1051, %v1131
        %v1172 = vadd.f32 %v1052, %v1132
        %v1173 = vadd.f32 %v1053, %v1133
        %v1174 = vadd.f32 %v1054, %v1134
        %v1175 = vadd.f32 %v1055, %v1135
        %v1176 = vadd.f32 %v1056, %v1136
        %v1177 = vadd.f32 %v1057, %v1137
        %v1178 = vadd.f32 %v1058, %v1138
        %v1179 = vadd.f32 %v1059, %v1139
        %v1180 = vadd.f32 %v1060, %v1140
        %v1181 = vadd.f32 %v1061, %v1141
        %v1182 = vadd.f32 %v1062, %v1142
        %v1183 = vadd.f32 %v1063, %v1143
        %v1184 = vadd.f32 %v1064, %v1144
        %v1185 = vadd.f32 %v1065, %v1145
        %v1186 = vadd.f32 %v1066, %v1146
        %v1187 = vadd.f32 %v1067, %v1147
        %v1188 = vadd.f32 %v1068, %v1148
        %v1189 = vadd.f32 %v1069, %v1149
        %v1190 = vadd.f32 %v1070, %v1150
        %v1191 = vadd.f32 %v1071, %v1151
        %v1192 = vadd.f32 %v1072, %v1152
        %v1193 = vadd.f32 %v1073, %v1153
        %v1194 = vadd.f32 %v1074, %v1154
        %v1195 = vld [vmem:[#allocation2 + $0x7] sm:$0xff]
        %v1196 = vld [vmem:[#allocation2 + $0xf] sm:$0xff]
        %v1197 = vld [vmem:[#allocation2 + $0x27] sm:$0xff]
        %v1198 = vld [vmem:[#allocation2 + $0x2f] sm:$0xff]
        %v1199 = vld [vmem:[#allocation2 + $0x47] sm:$0xff]
        %v1200 = vld [vmem:[#allocation2 + $0x4f] sm:$0xff]
        %v1201 = vld [vmem:[#allocation2 + $0x67] sm:$0xff]
        %v1202 = vld [vmem:[#allocation2 + $0x6f] sm:$0xff]
        %v1203 = vld [vmem:[#allocation2 + $0x87] sm:$0xff]
        %v1204 = vld [vmem:[#allocation2 + $0x8f] sm:$0xff]
        %v1205 = vld [vmem:[#allocation2 + $0xa7] sm:$0xff]
        %v1206 = vld [vmem:[#allocation2 + $0xaf] sm:$0xff]
        %v1207 = vld [vmem:[#allocation2 + $0xc7] sm:$0xff]
        %v1208 = vld [vmem:[#allocation2 + $0xcf] sm:$0xff]
        %v1209 = vld [vmem:[#allocation2 + $0xe7] sm:$0xff]
        %v1210 = vld [vmem:[#allocation2 + $0xef] sm:$0xff]
        %v1211 = vld [vmem:[#allocation2 + $0x107] sm:$0xff]
        %v1212 = vld [vmem:[#allocation2 + $0x10f] sm:$0xff]
        %v1213 = vld [vmem:[#allocation2 + $0x127] sm:$0xff]
        %v1214 = vld [vmem:[#allocation2 + $0x12f] sm:$0xff]
        %v1215 = vld [vmem:[#allocation2 + $0x147] sm:$0xff]
        %v1216 = vld [vmem:[#allocation2 + $0x14f] sm:$0xff]
        %v1217 = vld [vmem:[#allocation2 + $0x167] sm:$0xff]
        %v1218 = vld [vmem:[#allocation2 + $0x16f] sm:$0xff]
        %v1219 = vld [vmem:[#allocation2 + $0x187] sm:$0xff]
        %v1220 = vld [vmem:[#allocation2 + $0x18f] sm:$0xff]
        %v1221 = vld [vmem:[#allocation2 + $0x1a7] sm:$0xff]
        %v1222 = vld [vmem:[#allocation2 + $0x1af] sm:$0xff]
        %v1223 = vld [vmem:[#allocation2 + $0x1c7] sm:$0xff]
        %v1224 = vld [vmem:[#allocation2 + $0x1cf] sm:$0xff]
        %v1225 = vld [vmem:[#allocation2 + $0x1e7] sm:$0xff]
        %v1226 = vld [vmem:[#allocation2 + $0x1ef] sm:$0xff]
        %v1227 = vld [vmem:[#allocation2 + $0x207] sm:$0xff]
        %v1228 = vld [vmem:[#allocation2 + $0x20f] sm:$0xff]
        %v1229 = vld [vmem:[#allocation2 + $0x227] sm:$0xff]
        %v1230 = vld [vmem:[#allocation2 + $0x22f] sm:$0xff]
        %v1231 = vld [vmem:[#allocation2 + $0x247] sm:$0xff]
        %v1232 = vld [vmem:[#allocation2 + $0x24f] sm:$0xff]
        %v1233 = vld [vmem:[#allocation2 + $0x267] sm:$0xff]
        %v1234 = vld [vmem:[#allocation2 + $0x26f] sm:$0xff]
        %v1235 = vmul.f32 %v1195, 0.10936069
        %v1236 = vmul.f32 %v1196, 0.10936069
        %v1237 = vmul.f32 %v1197, 0.10936069
        %v1238 = vmul.f32 %v1198, 0.10936069
        %v1239 = vmul.f32 %v1199, 0.10936069
        %v1240 = vmul.f32 %v1200, 0.10936069
        %v1241 = vmul.f32 %v1201, 0.10936069
        %v1242 = vmul.f32 %v1202, 0.10936069
        %v1243 = vmul.f32 %v1203, 0.10936069
        %v1244 = vmul.f32 %v1204, 0.10936069
        %v1245 = vmul.f32 %v1205, 0.10936069
        %v1246 = vmul.f32 %v1206, 0.10936069
        %v1247 = vmul.f32 %v1207, 0.10936069
        %v1248 = vmul.f32 %v1208, 0.10936069
        %v1249 = vmul.f32 %v1209, 0.10936069
        %v1250 = vmul.f32 %v1210, 0.10936069
        %v1251 = vmul.f32 %v1211, 0.10936069
        %v1252 = vmul.f32 %v1212, 0.10936069
        %v1253 = vmul.f32 %v1213, 0.10936069
        %v1254 = vmul.f32 %v1214, 0.10936069
        %v1255 = vmul.f32 %v1215, 0.10936069
        %v1256 = vmul.f32 %v1216, 0.10936069
        %v1257 = vmul.f32 %v1217, 0.10936069
        %v1258 = vmul.f32 %v1218, 0.10936069
        %v1259 = vmul.f32 %v1219, 0.10936069
        %v1260 = vmul.f32 %v1220, 0.10936069
        %v1261 = vmul.f32 %v1221, 0.10936069
        %v1262 = vmul.f32 %v1222, 0.10936069
        %v1263 = vmul.f32 %v1223, 0.10936069
        %v1264 = vmul.f32 %v1224, 0.10936069
        %v1265 = vmul.f32 %v1225, 0.10936069
        %v1266 = vmul.f32 %v1226, 0.10936069
        %v1267 = vmul.f32 %v1227, 0.10936069
        %v1268 = vmul.f32 %v1228, 0.10936069
        %v1269 = vmul.f32 %v1229, 0.10936069
        %v1270 = vmul.f32 %v1230, 0.10936069
        %v1271 = vmul.f32 %v1231, 0.10936069
        %v1272 = vmul.f32 %v1232, 0.10936069
        %v1273 = vmul.f32 %v1233, 0.10936069
        %v1274 = vmul.f32 %v1234, 0.10936069
        %v1275 = vadd.f32 %v1155, %v1235
        %v1276 = vadd.f32 %v1156, %v1236
        %v1277 = vadd.f32 %v1157, %v1237
        %v1278 = vadd.f32 %v1158, %v1238
        %v1279 = vadd.f32 %v1159, %v1239
        %v1280 = vadd.f32 %v1160, %v1240
        %v1281 = vadd.f32 %v1161, %v1241
        %v1282 = vadd.f32 %v1162, %v1242
        %v1283 = vadd.f32 %v1163, %v1243
        %v1284 = vadd.f32 %v1164, %v1244
        %v1285 = vadd.f32 %v1165, %v1245
        %v1286 = vadd.f32 %v1166, %v1246
        %v1287 = vadd.f32 %v1167, %v1247
        %v1288 = vadd.f32 %v1168, %v1248
        %v1289 = vadd.f32 %v1169, %v1249
        %v1290 = vadd.f32 %v1170, %v1250
        %v1291 = vadd.f32 %v1171, %v1251
        %v1292 = vadd.f32 %v1172, %v1252
        %v1293 = vadd.f32 %v1173, %v1253
        %v1294 = vadd.f32 %v1174, %v1254
        %v1295 = vadd.f32 %v1175, %v1255
        %v1296 = vadd.f32 %v1176, %v1256
        %v1297 = vadd.f32 %v1177, %v1257
        %v1298 = vadd.f32 %v1178, %v1258
        %v1299 = vadd.f32 %v1179, %v1259
        %v1300 = vadd.f32 %v1180, %v1260
        %v1301 = vadd.f32 %v1181, %v1261
        %v1302 = vadd.f32 %v1182, %v1262
        %v1303 = vadd.f32 %v1183, %v1263
        %v1304 = vadd.f32 %v1184, %v1264
        %v1305 = vadd.f32 %v1185, %v1265
        %v1306 = vadd.f32 %v1186, %v1266
        %v1307 = vadd.f32 %v1187, %v1267
        %v1308 = vadd.f32 %v1188, %v1268
        %v1309 = vadd.f32 %v1189, %v1269
        %v1310 = vadd.f32 %v1190, %v1270
        %v1311 = vadd.f32 %v1191, %v1271
        %v1312 = vadd.f32 %v1192, %v1272
        %v1313 = vadd.f32 %v1193, %v1273
        %v1314 = vadd.f32 %v1194, %v1274
        %v1315 = vld [vmem:[#allocation2 + $0x10] sm:$0xff]
        %v1316 = vld [vmem:[#allocation2 + $0x30] sm:$0xff]
        %v1317 = vld [vmem:[#allocation2 + $0x50] sm:$0xff]
        %v1318 = vld [vmem:[#allocation2 + $0x70] sm:$0xff]
        %v1319 = vld [vmem:[#allocation2 + $0x90] sm:$0xff]
        %v1320 = vld [vmem:[#allocation2 + $0xb0] sm:$0xff]
        %v1321 = vld [vmem:[#allocation2 + $0xd0] sm:$0xff]
        %v1322 = vld [vmem:[#allocation2 + $0xf0] sm:$0xff]
        %v1323 = vld [vmem:[#allocation2 + $0x110] sm:$0xff]
        %v1324 = vld [vmem:[#allocation2 + $0x130] sm:$0xff]
        %v1325 = vld [vmem:[#allocation2 + $0x150] sm:$0xff]
        %v1326 = vld [vmem:[#allocation2 + $0x170] sm:$0xff]
        %v1327 = vld [vmem:[#allocation2 + $0x190] sm:$0xff]
        %v1328 = vld [vmem:[#allocation2 + $0x1b0] sm:$0xff]
        %v1329 = vld [vmem:[#allocation2 + $0x1d0] sm:$0xff]
        %v1330 = vld [vmem:[#allocation2 + $0x1f0] sm:$0xff]
        %v1331 = vld [vmem:[#allocation2 + $0x210] sm:$0xff]
        %v1332 = vld [vmem:[#allocation2 + $0x230] sm:$0xff]
        %v1333 = vld [vmem:[#allocation2 + $0x250] sm:$0xff]
        %v1334 = vld [vmem:[#allocation2 + $0x270] sm:$0xff]
        %v1335 = vmul.f32 %v396, 0.036000773
        %v1336 = vmul.f32 %v1315, 0.036000773
        %v1337 = vmul.f32 %v398, 0.036000773
        %v1338 = vmul.f32 %v1316, 0.036000773
        %v1339 = vmul.f32 %v400, 0.036000773
        %v1340 = vmul.f32 %v1317, 0.036000773
        %v1341 = vmul.f32 %v402, 0.036000773
        %v1342 = vmul.f32 %v1318, 0.036000773
        %v1343 = vmul.f32 %v404, 0.036000773
        %v1344 = vmul.f32 %v1319, 0.036000773
        %v1345 = vmul.f32 %v406, 0.036000773
        %v1346 = vmul.f32 %v1320, 0.036000773
        %v1347 = vmul.f32 %v408, 0.036000773
        %v1348 = vmul.f32 %v1321, 0.036000773
        %v1349 = vmul.f32 %v410, 0.036000773
        %v1350 = vmul.f32 %v1322, 0.036000773
        %v1351 = vmul.f32 %v412, 0.036000773
        %v1352 = vmul.f32 %v1323, 0.036000773
        %v1353 = vmul.f32 %v414, 0.036000773
        %v1354 = vmul.f32 %v1324, 0.036000773
        %v1355 = vmul.f32 %v416, 0.036000773
        %v1356 = vmul.f32 %v1325, 0.036000773
        %v1357 = vmul.f32 %v418, 0.036000773
        %v1358 = vmul.f32 %v1326, 0.036000773
        %v1359 = vmul.f32 %v420, 0.036000773
        %v1360 = vmul.f32 %v1327, 0.036000773
        %v1361 = vmul.f32 %v422, 0.036000773
        %v1362 = vmul.f32 %v1328, 0.036000773
        %v1363 = vmul.f32 %v424, 0.036000773
        %v1364 = vmul.f32 %v1329, 0.036000773
        %v1365 = vmul.f32 %v426, 0.036000773
        %v1366 = vmul.f32 %v1330, 0.036000773
        %v1367 = vmul.f32 %v428, 0.036000773
        %v1368 = vmul.f32 %v1331, 0.036000773
        %v1369 = vmul.f32 %v430, 0.036000773
        %v1370 = vmul.f32 %v1332, 0.036000773
        %v1371 = vmul.f32 %v432, 0.036000773
        %v1372 = vmul.f32 %v1333, 0.036000773
        %v1373 = vmul.f32 %v434, 0.036000773
        %v1374 = vmul.f32 %v1334, 0.036000773
        %v1375 = vadd.f32 %v1275, %v1335
        %v1376 = vadd.f32 %v1276, %v1336
        %v1377 = vadd.f32 %v1277, %v1337
        %v1378 = vadd.f32 %v1278, %v1338
        %v1379 = vadd.f32 %v1279, %v1339
        %v1380 = vadd.f32 %v1280, %v1340
        %v1381 = vadd.f32 %v1281, %v1341
        %v1382 = vadd.f32 %v1282, %v1342
        %v1383 = vadd.f32 %v1283, %v1343
        %v1384 = vadd.f32 %v1284, %v1344
        %v1385 = vadd.f32 %v1285, %v1345
        %v1386 = vadd.f32 %v1286, %v1346
        %v1387 = vadd.f32 %v1287, %v1347
        %v1388 = vadd.f32 %v1288, %v1348
        %v1389 = vadd.f32 %v1289, %v1349
        %v1390 = vadd.f32 %v1290, %v1350
        %v1391 = vadd.f32 %v1291, %v1351
        %v1392 = vadd.f32 %v1292, %v1352
        %v1393 = vadd.f32 %v1293, %v1353
        %v1394 = vadd.f32 %v1294, %v1354
        %v1395 = vadd.f32 %v1295, %v1355
        %v1396 = vadd.f32 %v1296, %v1356
        %v1397 = vadd.f32 %v1297, %v1357
        %v1398 = vadd.f32 %v1298, %v1358
        %v1399 = vadd.f32 %v1299, %v1359
        %v1400 = vadd.f32 %v1300, %v1360
        %v1401 = vadd.f32 %v1301, %v1361
        %v1402 = vadd.f32 %v1302, %v1362
        %v1403 = vadd.f32 %v1303, %v1363
        %v1404 = vadd.f32 %v1304, %v1364
        %v1405 = vadd.f32 %v1305, %v1365
        %v1406 = vadd.f32 %v1306, %v1366
        %v1407 = vadd.f32 %v1307, %v1367
        %v1408 = vadd.f32 %v1308, %v1368
        %v1409 = vadd.f32 %v1309, %v1369
        %v1410 = vadd.f32 %v1310, %v1370
        %v1411 = vadd.f32 %v1311, %v1371
        %v1412 = vadd.f32 %v1312, %v1372
        %v1413 = vadd.f32 %v1313, %v1373
        %v1414 = vadd.f32 %v1314, %v1374
        %v1415 = vld [vmem:[#allocation2 + $0x11] sm:$0xff]
        %v1416 = vld [vmem:[#allocation2 + $0x31] sm:$0xff]
        %v1417 = vld [vmem:[#allocation2 + $0x51] sm:$0xff]
        %v1418 = vld [vmem:[#allocation2 + $0x71] sm:$0xff]
        %v1419 = vld [vmem:[#allocation2 + $0x91] sm:$0xff]
        %v1420 = vld [vmem:[#allocation2 + $0xb1] sm:$0xff]
        %v1421 = vld [vmem:[#allocation2 + $0xd1] sm:$0xff]
        %v1422 = vld [vmem:[#allocation2 + $0xf1] sm:$0xff]
        %v1423 = vld [vmem:[#allocation2 + $0x111] sm:$0xff]
        %v1424 = vld [vmem:[#allocation2 + $0x131] sm:$0xff]
        %v1425 = vld [vmem:[#allocation2 + $0x151] sm:$0xff]
        %v1426 = vld [vmem:[#allocation2 + $0x171] sm:$0xff]
        %v1427 = vld [vmem:[#allocation2 + $0x191] sm:$0xff]
        %v1428 = vld [vmem:[#allocation2 + $0x1b1] sm:$0xff]
        %v1429 = vld [vmem:[#allocation2 + $0x1d1] sm:$0xff]
        %v1430 = vld [vmem:[#allocation2 + $0x1f1] sm:$0xff]
        %v1431 = vld [vmem:[#allocation2 + $0x211] sm:$0xff]
        %v1432 = vld [vmem:[#allocation2 + $0x231] sm:$0xff]
        %v1433 = vld [vmem:[#allocation2 + $0x251] sm:$0xff]
        %v1434 = vld [vmem:[#allocation2 + $0x271] sm:$0xff]
        %v1435 = vmul.f32 %v1415, 0.007598758
        %v1436 = vmul.f32 %v1416, 0.007598758
        %v1437 = vmul.f32 %v1417, 0.007598758
        %v1438 = vmul.f32 %v1418, 0.007598758
        %v1439 = vmul.f32 %v1419, 0.007598758
        %v1440 = vmul.f32 %v1420, 0.007598758
        %v1441 = vmul.f32 %v1421, 0.007598758
        %v1442 = vmul.f32 %v1422, 0.007598758
        %v1443 = vmul.f32 %v1423, 0.007598758
        %v1444 = vmul.f32 %v1424, 0.007598758
        %v1445 = vmul.f32 %v1425, 0.007598758
        %v1446 = vmul.f32 %v1426, 0.007598758
        %v1447 = vmul.f32 %v1427, 0.007598758
        %v1448 = vmul.f32 %v1428, 0.007598758
        %v1449 = vmul.f32 %v1429, 0.007598758
        %v1450 = vmul.f32 %v1430, 0.007598758
        %v1451 = vmul.f32 %v1431, 0.007598758
        %v1452 = vmul.f32 %v1432, 0.007598758
        %v1453 = vmul.f32 %v1433, 0.007598758
        %v1454 = vmul.f32 %v1434, 0.007598758
        %v1455 = vadd.f32 %v1375, %v516
        %v1456 = vadd.f32 %v1376, %v1435
        %v1457 = vadd.f32 %v1377, %v518
        %v1458 = vadd.f32 %v1378, %v1436
        %v1459 = vadd.f32 %v1379, %v520
        %v1460 = vadd.f32 %v1380, %v1437
        %v1461 = vadd.f32 %v1381, %v522
        %v1462 = vadd.f32 %v1382, %v1438
        %v1463 = vadd.f32 %v1383, %v524
        %v1464 = vadd.f32 %v1384, %v1439
        %v1465 = vadd.f32 %v1385, %v526
        %v1466 = vadd.f32 %v1386, %v1440
        %v1467 = vadd.f32 %v1387, %v528
        %v1468 = vadd.f32 %v1388, %v1441
        %v1469 = vadd.f32 %v1389, %v530
        %v1470 = vadd.f32 %v1390, %v1442
        %v1471 = vadd.f32 %v1391, %v532
        %v1472 = vadd.f32 %v1392, %v1443
        %v1473 = vadd.f32 %v1393, %v534
        %v1474 = vadd.f32 %v1394, %v1444
        %v1475 = vadd.f32 %v1395, %v536
        %v1476 = vadd.f32 %v1396, %v1445
        %v1477 = vadd.f32 %v1397, %v538
        %v1478 = vadd.f32 %v1398, %v1446
        %v1479 = vadd.f32 %v1399, %v540
        %v1480 = vadd.f32 %v1400, %v1447
        %v1481 = vadd.f32 %v1401, %v542
        %v1482 = vadd.f32 %v1402, %v1448
        %v1483 = vadd.f32 %v1403, %v544
        %v1484 = vadd.f32 %v1404, %v1449
        %v1485 = vadd.f32 %v1405, %v546
        %v1486 = vadd.f32 %v1406, %v1450
        %v1487 = vadd.f32 %v1407, %v548
        %v1488 = vadd.f32 %v1408, %v1451
        %v1489 = vadd.f32 %v1409, %v550
        %v1490 = vadd.f32 %v1410, %v1452
        %v1491 = vadd.f32 %v1411, %v552
        %v1492 = vadd.f32 %v1412, %v1453
        %v1493 = vadd.f32 %v1413, %v554
        %v1494 = vadd.f32 %v1414, %v1454
        %v1495 = vld [vmem:[#allocation2 + $0x12] sm:$0xff]
        %v1496 = vld [vmem:[#allocation2 + $0x32] sm:$0xff]
        %v1497 = vld [vmem:[#allocation2 + $0x52] sm:$0xff]
        %v1498 = vld [vmem:[#allocation2 + $0x72] sm:$0xff]
        %v1499 = vld [vmem:[#allocation2 + $0x92] sm:$0xff]
        %v1500 = vld [vmem:[#allocation2 + $0xb2] sm:$0xff]
        %v1501 = vld [vmem:[#allocation2 + $0xd2] sm:$0xff]
        %v1502 = vld [vmem:[#allocation2 + $0xf2] sm:$0xff]
        %v1503 = vld [vmem:[#allocation2 + $0x112] sm:$0xff]
        %v1504 = vld [vmem:[#allocation2 + $0x132] sm:$0xff]
        %v1505 = vld [vmem:[#allocation2 + $0x152] sm:$0xff]
        %v1506 = vld [vmem:[#allocation2 + $0x172] sm:$0xff]
        %v1507 = vld [vmem:[#allocation2 + $0x192] sm:$0xff]
        %v1508 = vld [vmem:[#allocation2 + $0x1b2] sm:$0xff]
        %v1509 = vld [vmem:[#allocation2 + $0x1d2] sm:$0xff]
        %v1510 = vld [vmem:[#allocation2 + $0x1f2] sm:$0xff]
        %v1511 = vld [vmem:[#allocation2 + $0x212] sm:$0xff]
        %v1512 = vld [vmem:[#allocation2 + $0x232] sm:$0xff]
        %v1513 = vld [vmem:[#allocation2 + $0x252] sm:$0xff]
        %v1514 = vld [vmem:[#allocation2 + $0x272] sm:$0xff]
        %v1515 = vmul.f32 %v596, 0.0010283801
        %v1516 = vmul.f32 %v1495, 0.0010283801
        %v1517 = vmul.f32 %v598, 0.0010283801
        %v1518 = vmul.f32 %v1496, 0.0010283801
        %v1519 = vmul.f32 %v600, 0.0010283801
        %v1520 = vmul.f32 %v1497, 0.0010283801
        %v1521 = vmul.f32 %v602, 0.0010283801
        %v1522 = vmul.f32 %v1498, 0.0010283801
        %v1523 = vmul.f32 %v604, 0.0010283801
        %v1524 = vmul.f32 %v1499, 0.0010283801
        %v1525 = vmul.f32 %v606, 0.0010283801
        %v1526 = vmul.f32 %v1500, 0.0010283801
        %v1527 = vmul.f32 %v608, 0.0010283801
        %v1528 = vmul.f32 %v1501, 0.0010283801
        %v1529 = vmul.f32 %v610, 0.0010283801
        %v1530 = vmul.f32 %v1502, 0.0010283801
        %v1531 = vmul.f32 %v612, 0.0010283801
        %v1532 = vmul.f32 %v1503, 0.0010283801
        %v1533 = vmul.f32 %v614, 0.0010283801
        %v1534 = vmul.f32 %v1504, 0.0010283801
        %v1535 = vmul.f32 %v616, 0.0010283801
        %v1536 = vmul.f32 %v1505, 0.0010283801
        %v1537 = vmul.f32 %v618, 0.0010283801
        %v1538 = vmul.f32 %v1506, 0.0010283801
        %v1539 = vmul.f32 %v620, 0.0010283801
        %v1540 = vmul.f32 %v1507, 0.0010283801
        %v1541 = vmul.f32 %v622, 0.0010283801
        %v1542 = vmul.f32 %v1508, 0.0010283801
        %v1543 = vmul.f32 %v624, 0.0010283801
        %v1544 = vmul.f32 %v1509, 0.0010283801
        %v1545 = vmul.f32 %v626, 0.0010283801
        %v1546 = vmul.f32 %v1510, 0.0010283801
        %v1547 = vmul.f32 %v628, 0.0010283801
        %v1548 = vmul.f32 %v1511, 0.0010283801
        %v1549 = vmul.f32 %v630, 0.0010283801
        %v1550 = vmul.f32 %v1512, 0.0010283801
        %v1551 = vmul.f32 %v632, 0.0010283801
        %v1552 = vmul.f32 %v1513, 0.0010283801
        %v1553 = vmul.f32 %v634, 0.0010283801
        %v1554 = vmul.f32 %v1514, 0.0010283801
        %v1555 = vadd.f32 %v1455, %v1515
        %v1556 = vadd.f32 %v1456, %v1516
        %v1557 = vadd.f32 %v1457, %v1517
        %v1558 = vadd.f32 %v1458, %v1518
        %v1559 = vadd.f32 %v1459, %v1519
        %v1560 = vadd.f32 %v1460, %v1520
        %v1561 = vadd.f32 %v1461, %v1521
        %v1562 = vadd.f32 %v1462, %v1522
        %v1563 = vadd.f32 %v1463, %v1523
        %v1564 = vadd.f32 %v1464, %v1524
        %v1565 = vadd.f32 %v1465, %v1525
        %v1566 = vadd.f32 %v1466, %v1526
        %v1567 = vadd.f32 %v1467, %v1527
        %v1568 = vadd.f32 %v1468, %v1528
        %v1569 = vadd.f32 %v1469, %v1529
        %v1570 = vadd.f32 %v1470, %v1530
        %v1571 = vadd.f32 %v1471, %v1531
        %v1572 = vadd.f32 %v1472, %v1532
        %v1573 = vadd.f32 %v1473, %v1533
        %v1574 = vadd.f32 %v1474, %v1534
        %v1575 = vadd.f32 %v1475, %v1535
        %v1576 = vadd.f32 %v1476, %v1536
        %v1577 = vadd.f32 %v1477, %v1537
        %v1578 = vadd.f32 %v1478, %v1538
        %v1579 = vadd.f32 %v1479, %v1539
        %v1580 = vadd.f32 %v1480, %v1540
        %v1581 = vadd.f32 %v1481, %v1541
        %v1582 = vadd.f32 %v1482, %v1542
        %v1583 = vadd.f32 %v1483, %v1543
        %v1584 = vadd.f32 %v1484, %v1544
        %v1585 = vadd.f32 %v1485, %v1545
        %v1586 = vadd.f32 %v1486, %v1546
        %v1587 = vadd.f32 %v1487, %v1547
        %v1588 = vadd.f32 %v1488, %v1548
        %v1589 = vadd.f32 %v1489, %v1549
        %v1590 = vadd.f32 %v1490, %v1550
        %v1591 = vadd.f32 %v1491, %v1551
        %v1592 = vadd.f32 %v1492, %v1552
        %v1593 = vadd.f32 %v1493, %v1553
        %v1594 = vadd.f32 %v1494, %v1554
        %v1595 = vld [vmem:[#allocation8] sm:$0xff]
        %v1596 = vld [vmem:[#allocation8 + $0x8] sm:$0xff]
        %v1597 = vld [vmem:[#allocation8 + $0x10] sm:$0xff]
        %v1598 = vld [vmem:[#allocation8 + $0x18] sm:$0xff]
        %v1599 = vld [vmem:[#allocation8 + $0x20] sm:$0xff]
        %v1600 = vld [vmem:[#allocation8 + $0x28] sm:$0xff]
        %v1601 = vld [vmem:[#allocation8 + $0x30] sm:$0xff]
        %v1602 = vld [vmem:[#allocation8 + $0x38] sm:$0xff]
        %v1603 = vld [vmem:[#allocation8 + $0x40] sm:$0xff]
        %v1604 = vld [vmem:[#allocation8 + $0x48] sm:$0xff]
        %v1605 = vld [vmem:[#allocation8 + $0x50] sm:$0xff]
        %v1606 = vld [vmem:[#allocation8 + $0x58] sm:$0xff]
        %v1607 = vld [vmem:[#allocation8 + $0x60] sm:$0xff]
        %v1608 = vld [vmem:[#allocation8 + $0x68] sm:$0xff]
        %v1609 = vld [vmem:[#allocation8 + $0x70] sm:$0xff]
        %v1610 = vld [vmem:[#allocation8 + $0x78] sm:$0xff]
        %1611 = vmatprep.subr.mxu0 0.0
        %1612 = vmatpush1.msra.mxu0 %v1595
        %1613 = vmatprep.subr.mxu0 0.0
        %1614 = vmatpush1.msra.mxu0 %v1596
        %1615 = vmatprep.subr.mxu0 0.0
        %1616 = vmatpush1.msra.mxu0 %v1597
        %1617 = vmatprep.subr.mxu0 0.0
        %1618 = vmatpush1.msra.mxu0 %v1598
        %1619 = vmatprep.subr.mxu0 0.0
        %1620 = vmatpush1.msra.mxu0 %v1599
        %1621 = vmatprep.subr.mxu0 0.0
        %1622 = vmatpush1.msra.mxu0 %v1600
        %1623 = vmatprep.subr.mxu0 0.0
        %1624 = vmatpush1.msra.mxu0 %v1601
        %1625 = vmatprep.subr.mxu0 0.0
        %1626 = vmatpush1.msra.mxu0 %v1602
        %1627 = vmatprep.subr.mxu0 0.0
        %1628 = vmatpush1.msra.mxu0 %v1603
        %1629 = vmatprep.subr.mxu0 0.0
        %1630 = vmatpush1.msra.mxu0 %v1604
        %1631 = vmatprep.subr.mxu0 0.0
        %1632 = vmatpush1.msra.mxu0 %v1605
        %1633 = vmatprep.subr.mxu0 0.0
        %1634 = vmatpush1.msra.mxu0 %v1606
        %1635 = vmatprep.subr.mxu0 0.0
        %1636 = vmatpush1.msra.mxu0 %v1607
        %1637 = vmatprep.subr.mxu0 0.0
        %1638 = vmatpush1.msra.mxu0 %v1608
        %1639 = vmatprep.subr.mxu0 0.0
        %1640 = vmatpush1.msra.mxu0 %v1609
        %1641 = vmatprep.subr.mxu0 0.0
        %1642 = vmatpush1.msra.mxu0 %v1610
        %1643 = vmatprep.subr.mxu0 0.0
        %1644 = vmatpush1.msra.mxu0 0.0
        %1645 = vmatprep.subr.mxu0 0.0
        %1646 = vmatpush1.msra.mxu0 0.0
        %1647 = vmatprep.subr.mxu0 0.0
        %1648 = vmatpush1.msra.mxu0 0.0
        %1649 = vmatprep.subr.mxu0 0.0
        %1650 = vmatpush1.msra.mxu0 0.0
        %1651 = vmatprep.subr.mxu0 0.0
        %1652 = vmatpush1.msra.mxu0 0.0
        %1653 = vmatprep.subr.mxu0 0.0
        %1654 = vmatpush1.msra.mxu0 0.0
        %1655 = vmatprep.subr.mxu0 0.0
        %1656 = vmatpush1.msra.mxu0 0.0
        %1657 = vmatprep.subr.mxu0 0.0
        %1658 = vmatpush1.msra.mxu0 0.0
        %1659 = vmatprep.subr.mxu0 0.0
        %1660 = vmatpush1.msra.mxu0 0.0
        %1661 = vmatprep.subr.mxu0 0.0
        %1662 = vmatpush1.msra.mxu0 0.0
        %1663 = vmatprep.subr.mxu0 0.0
        %1664 = vmatpush1.msra.mxu0 0.0
        %1665 = vmatprep.subr.mxu0 0.0
        %1666 = vmatpush1.msra.mxu0 0.0
        %1667 = vmatprep.subr.mxu0 0.0
        %1668 = vmatpush1.msra.mxu0 0.0
        %1669 = vmatprep.subr.mxu0 0.0
        %1670 = vmatpush1.msra.mxu0 0.0
        %1671 = vmatprep.subr.mxu0 0.0
        %1672 = vmatpush1.msra.mxu0 0.0
        %1673 = vmatprep.subr.mxu0 0.0
        %1674 = vmatpush1.msra.mxu0 0.0
        %1675 = vmatprep.mubr.f32.mxu0 0.0
        %1676 = vmatmul.mubr.f32.gmra.mrb[0].mxu0 %v1555
        %v1677 = vpop.f32.mrb[0].mxu0
        %v1678 = vadd.f32 0.0, %v1677
        %v1679 = vpop.f32.mrb[0].mxu0
        %1680 = vmatprep.mubr.f32.mxu0 0.0
        %1681 = vmatmul.mubr.f32.gmra.mrb[0].mxu0 %v1556
        %v1682 = vpop.f32.mrb[0].mxu0
        %v1683 = vadd.f32 0.0, %v1682
        %v1684 = vpop.f32.mrb[0].mxu0
        %1685 = vmatprep.mubr.f32.mxu0 0.0
        %1686 = vmatmul.mubr.f32.gmra.mrb[0].mxu0 %v1557
        %v1687 = vpop.f32.mrb[0].mxu0
        %v1688 = vadd.f32 0.0, %v1687
        %v1689 = vpop.f32.mrb[0].mxu0
        %1690 = vmatprep.mubr.f32.mxu0 0.0
        %1691 = vmatmul.mubr.f32.gmra.mrb[0].mxu0 %v1558
        %v1692 = vpop.f32.mrb[0].mxu0
        %v1693 = vadd.f32 0.0, %v1692
        %v1694 = vpop.f32.mrb[0].mxu0
        %1695 = vmatprep.mubr.f32.mxu0 0.0
        %1696 = vmatmul.mubr.f32.gmra.mrb[0].mxu0 %v1559
        %v1697 = vpop.f32.mrb[0].mxu0
        %v1698 = vadd.f32 0.0, %v1697
        %v1699 = vpop.f32.mrb[0].mxu0
        %1700 = vmatprep.mubr.f32.mxu0 0.0
        %1701 = vmatmul.mubr.f32.gmra.mrb[0].mxu0 %v1560
        %v1702 = vpop.f32.mrb[0].mxu0
        %v1703 = vadd.f32 0.0, %v1702
        %v1704 = vpop.f32.mrb[0].mxu0
        %1705 = vmatprep.mubr.f32.mxu0 0.0
        %1706 = vmatmul.mubr.f32.gmra.mrb[0].mxu0 %v1561
        %v1707 = vpop.f32.mrb[0].mxu0
        %v1708 = vadd.f32 0.0, %v1707
        %v1709 = vpop.f32.mrb[0].mxu0
        %1710 = vmatprep.mubr.f32.mxu0 0.0
        %1711 = vmatmul.mubr.f32.gmra.mrb[0].mxu0 %v1562
        %v1712 = vpop.f32.mrb[0].mxu0
        %v1713 = vadd.f32 0.0, %v1712
        %v1714 = vpop.f32.mrb[0].mxu0
        %1715 = vmatprep.mubr.f32.mxu0 0.0
        %1716 = vmatmul.mubr.f32.gmra.mrb[0].mxu0 %v1563
        %v1717 = vpop.f32.mrb[0].mxu0
        %v1718 = vadd.f32 0.0, %v1717
        %v1719 = vpop.f32.mrb[0].mxu0
        %1720 = vmatprep.mubr.f32.mxu0 0.0
        %1721 = vmatmul.mubr.f32.gmra.mrb[0].mxu0 %v1564
        %v1722 = vpop.f32.mrb[0].mxu0
        %v1723 = vadd.f32 0.0, %v1722
        %v1724 = vpop.f32.mrb[0].mxu0
        %1725 = vmatprep.mubr.f32.mxu0 0.0
        %1726 = vmatmul.mubr.f32.gmra.mrb[0].mxu0 %v1565
        %v1727 = vpop.f32.mrb[0].mxu0
        %v1728 = vadd.f32 0.0, %v1727
        %v1729 = vpop.f32.mrb[0].mxu0
        %1730 = vmatprep.mubr.f32.mxu0 0.0
        %1731 = vmatmul.mubr.f32.gmra.mrb[0].mxu0 %v1566
        %v1732 = vpop.f32.mrb[0].mxu0
        %v1733 = vadd.f32 0.0, %v1732
        %v1734 = vpop.f32.mrb[0].mxu0
        %1735 = vmatprep.mubr.f32.mxu0 0.0
        %1736 = vmatmul.mubr.f32.gmra.mrb[0].mxu0 %v1567
        %v1737 = vpop.f32.mrb[0].mxu0
        %v1738 = vadd.f32 0.0, %v1737
        %v1739 = vpop.f32.mrb[0].mxu0
        %1740 = vmatprep.mubr.f32.mxu0 0.0
        %1741 = vmatmul.mubr.f32.gmra.mrb[0].mxu0 %v1568
        %v1742 = vpop.f32.mrb[0].mxu0
        %v1743 = vadd.f32 0.0, %v1742
        %v1744 = vpop.f32.mrb[0].mxu0
        %1745 = vmatprep.mubr.f32.mxu0 0.0
        %1746 = vmatmul.mubr.f32.gmra.mrb[0].mxu0 %v1569
        %v1747 = vpop.f32.mrb[0].mxu0
        %v1748 = vadd.f32 0.0, %v1747
        %v1749 = vpop.f32.mrb[0].mxu0
        %1750 = vmatprep.mubr.f32.mxu0 0.0
        %1751 = vmatmul.mubr.f32.gmra.mrb[0].mxu0 %v1570
        %v1752 = vpop.f32.mrb[0].mxu0
        %v1753 = vadd.f32 0.0, %v1752
        %v1754 = vpop.f32.mrb[0].mxu0
        %1755 = vmatprep.mubr.f32.mxu0 0.0
        %1756 = vmatmul.mubr.f32.gmra.mrb[0].mxu0 %v1571
        %v1757 = vpop.f32.mrb[0].mxu0
        %v1758 = vadd.f32 0.0, %v1757
        %v1759 = vpop.f32.mrb[0].mxu0
        %1760 = vmatprep.mubr.f32.mxu0 0.0
        %1761 = vmatmul.mubr.f32.gmra.mrb[0].mxu0 %v1572
        %v1762 = vpop.f32.mrb[0].mxu0
        %v1763 = vadd.f32 0.0, %v1762
        %v1764 = vpop.f32.mrb[0].mxu0
        %1765 = vmatprep.mubr.f32.mxu0 0.0
        %1766 = vmatmul.mubr.f32.gmra.mrb[0].mxu0 %v1573
        %v1767 = vpop.f32.mrb[0].mxu0
        %v1768 = vadd.f32 0.0, %v1767
        %v1769 = vpop.f32.mrb[0].mxu0
        %1770 = vmatprep.mubr.f32.mxu0 0.0
        %1771 = vmatmul.mubr.f32.gmra.mrb[0].mxu0 %v1574
        %v1772 = vpop.f32.mrb[0].mxu0
        %v1773 = vadd.f32 0.0, %v1772
        %v1774 = vpop.f32.mrb[0].mxu0
        %1775 = vmatprep.mubr.f32.mxu0 0.0
        %1776 = vmatmul.mubr.f32.gmra.mrb[0].mxu0 %v1575
        %v1777 = vpop.f32.mrb[0].mxu0
        %v1778 = vadd.f32 0.0, %v1777
        %v1779 = vpop.f32.mrb[0].mxu0
        %1780 = vmatprep.mubr.f32.mxu0 0.0
        %1781 = vmatmul.mubr.f32.gmra.mrb[0].mxu0 %v1576
        %v1782 = vpop.f32.mrb[0].mxu0
        %v1783 = vadd.f32 0.0, %v1782
        %v1784 = vpop.f32.mrb[0].mxu0
        %1785 = vmatprep.mubr.f32.mxu0 0.0
        %1786 = vmatmul.mubr.f32.gmra.mrb[0].mxu0 %v1577
        %v1787 = vpop.f32.mrb[0].mxu0
        %v1788 = vadd.f32 0.0, %v1787
        %v1789 = vpop.f32.mrb[0].mxu0
        %1790 = vmatprep.mubr.f32.mxu0 0.0
        %1791 = vmatmul.mubr.f32.gmra.mrb[0].mxu0 %v1578
        %v1792 = vpop.f32.mrb[0].mxu0
        %v1793 = vadd.f32 0.0, %v1792
        %v1794 = vpop.f32.mrb[0].mxu0
        %1795 = vmatprep.mubr.f32.mxu0 0.0
        %1796 = vmatmul.mubr.f32.gmra.mrb[0].mxu0 %v1579
        %v1797 = vpop.f32.mrb[0].mxu0
        %v1798 = vadd.f32 0.0, %v1797
        %v1799 = vpop.f32.mrb[0].mxu0
        %1800 = vmatprep.mubr.f32.mxu0 0.0
        %1801 = vmatmul.mubr.f32.gmra.mrb[0].mxu0 %v1580
        %v1802 = vpop.f32.mrb[0].mxu0
        %v1803 = vadd.f32 0.0, %v1802
        %v1804 = vpop.f32.mrb[0].mxu0
        %1805 = vmatprep.mubr.f32.mxu0 0.0
        %1806 = vmatmul.mubr.f32.gmra.mrb[0].mxu0 %v1581
        %v1807 = vpop.f32.mrb[0].mxu0
        %v1808 = vadd.f32 0.0, %v1807
        %v1809 = vpop.f32.mrb[0].mxu0
        %1810 = vmatprep.mubr.f32.mxu0 0.0
        %1811 = vmatmul.mubr.f32.gmra.mrb[0].mxu0 %v1582
        %v1812 = vpop.f32.mrb[0].mxu0
        %v1813 = vadd.f32 0.0, %v1812
        %v1814 = vpop.f32.mrb[0].mxu0
        %1815 = vmatprep.mubr.f32.mxu0 0.0
        %1816 = vmatmul.mubr.f32.gmra.mrb[0].mxu0 %v1583
        %v1817 = vpop.f32.mrb[0].mxu0
        %v1818 = vadd.f32 0.0, %v1817
        %v1819 = vpop.f32.mrb[0].mxu0
        %1820 = vmatprep.mubr.f32.mxu0 0.0
        %1821 = vmatmul.mubr.f32.gmra.mrb[0].mxu0 %v1584
        %v1822 = vpop.f32.mrb[0].mxu0
        %v1823 = vadd.f32 0.0, %v1822
        %v1824 = vpop.f32.mrb[0].mxu0
        %1825 = vmatprep.mubr.f32.mxu0 0.0
        %1826 = vmatmul.mubr.f32.gmra.mrb[0].mxu0 %v1585
        %v1827 = vpop.f32.mrb[0].mxu0
        %v1828 = vadd.f32 0.0, %v1827
        %v1829 = vpop.f32.mrb[0].mxu0
        %1830 = vmatprep.mubr.f32.mxu0 0.0
        %1831 = vmatmul.mubr.f32.gmra.mrb[0].mxu0 %v1586
        %v1832 = vpop.f32.mrb[0].mxu0
        %v1833 = vadd.f32 0.0, %v1832
        %v1834 = vpop.f32.mrb[0].mxu0
        %1835 = vmatprep.mubr.f32.mxu0 0.0
        %1836 = vmatmul.mubr.f32.gmra.mrb[0].mxu0 %v1587
        %v1837 = vpop.f32.mrb[0].mxu0
        %v1838 = vadd.f32 0.0, %v1837
        %v1839 = vpop.f32.mrb[0].mxu0
        %1840 = vmatprep.mubr.f32.mxu0 0.0
        %1841 = vmatmul.mubr.f32.gmra.mrb[0].mxu0 %v1588
        %v1842 = vpop.f32.mrb[0].mxu0
        %v1843 = vadd.f32 0.0, %v1842
        %v1844 = vpop.f32.mrb[0].mxu0
        %1845 = vmatprep.mubr.f32.mxu0 0.0
        %1846 = vmatmul.mubr.f32.gmra.mrb[0].mxu0 %v1589
        %v1847 = vpop.f32.mrb[0].mxu0
        %v1848 = vadd.f32 0.0, %v1847
        %v1849 = vpop.f32.mrb[0].mxu0
        %1850 = vmatprep.mubr.f32.mxu0 0.0
        %1851 = vmatmul.mubr.f32.gmra.mrb[0].mxu0 %v1590
        %v1852 = vpop.f32.mrb[0].mxu0
        %v1853 = vadd.f32 0.0, %v1852
        %v1854 = vpop.f32.mrb[0].mxu0
        %1855 = vmatprep.mubr.f32.mxu0 0.0
        %1856 = vmatmul.mubr.f32.gmra.mrb[0].mxu0 %v1591
        %v1857 = vpop.f32.mrb[0].mxu0
        %v1858 = vadd.f32 0.0, %v1857
        %v1859 = vpop.f32.mrb[0].mxu0
        %1860 = vmatprep.mubr.f32.mxu0 0.0
        %1861 = vmatmul.mubr.f32.gmra.mrb[0].mxu0 %v1592
        %v1862 = vpop.f32.mrb[0].mxu0
        %v1863 = vadd.f32 0.0, %v1862
        %v1864 = vpop.f32.mrb[0].mxu0
        %1865 = vmatprep.mubr.f32.mxu0 0.0
        %1866 = vmatmul.mubr.f32.gmra.mrb[0].mxu0 %v1593
        %v1867 = vpop.f32.mrb[0].mxu0
        %v1868 = vadd.f32 0.0, %v1867
        %v1869 = vpop.f32.mrb[0].mxu0
        %1870 = vmatprep.mubr.f32.mxu0 0.0
        %1871 = vmatmul.mubr.f32.gmra.mrb[0].mxu0 %v1594
        %v1872 = vpop.f32.mrb[0].mxu0
        %v1873 = vadd.f32 0.0, %v1872
        %v1874 = vpop.f32.mrb[0].mxu0
        %1875 = vdwg.mxu0
        %v1876 = vmul.f32 %v1678, %v1678
        %v1877 = vmul.f32 %v1683, %v1683
        %v1878 = vmul.f32 %v1688, %v1688
        %v1879 = vmul.f32 %v1693, %v1693
        %v1880 = vmul.f32 %v1698, %v1698
        %v1881 = vmul.f32 %v1703, %v1703
        %v1882 = vmul.f32 %v1708, %v1708
        %v1883 = vmul.f32 %v1713, %v1713
        %v1884 = vmul.f32 %v1718, %v1718
        %v1885 = vmul.f32 %v1723, %v1723
        %v1886 = vmul.f32 %v1728, %v1728
        %v1887 = vmul.f32 %v1733, %v1733
        %v1888 = vmul.f32 %v1738, %v1738
        %v1889 = vmul.f32 %v1743, %v1743
        %v1890 = vmul.f32 %v1748, %v1748
        %v1891 = vmul.f32 %v1753, %v1753
        %v1892 = vmul.f32 %v1678, %v1718
        %v1893 = vmul.f32 %v1683, %v1723
        %v1894 = vmul.f32 %v1688, %v1728
        %v1895 = vmul.f32 %v1693, %v1733
        %v1896 = vmul.f32 %v1698, %v1738
        %v1897 = vmul.f32 %v1703, %v1743
        %v1898 = vmul.f32 %v1708, %v1748
        %v1899 = vmul.f32 %v1713, %v1753
        %v1900 = vsub.f32 %v1758, %v1876
        %v1901 = vsub.f32 %v1763, %v1877
        %v1902 = vsub.f32 %v1768, %v1878
        %v1903 = vsub.f32 %v1773, %v1879
        %v1904 = vsub.f32 %v1778, %v1880
        %v1905 = vsub.f32 %v1783, %v1881
        %v1906 = vsub.f32 %v1788, %v1882
        %v1907 = vsub.f32 %v1793, %v1883
        %v1908 = vsub.f32 %v1798, %v1884
        %v1909 = vsub.f32 %v1803, %v1885
        %v1910 = vsub.f32 %v1808, %v1886
        %v1911 = vsub.f32 %v1813, %v1887
        %v1912 = vsub.f32 %v1818, %v1888
        %v1913 = vsub.f32 %v1823, %v1889
        %v1914 = vsub.f32 %v1828, %v1890
        %v1915 = vsub.f32 %v1833, %v1891
        %v1916 = vsub.f32 %v1838, %v1892
        %v1917 = vsub.f32 %v1843, %v1893
        %v1918 = vsub.f32 %v1848, %v1894
        %v1919 = vsub.f32 %v1853, %v1895
        %v1920 = vsub.f32 %v1858, %v1896
        %v1921 = vsub.f32 %v1863, %v1897
        %v1922 = vsub.f32 %v1868, %v1898
        %v1923 = vsub.f32 %v1873, %v1899
        %v1924 = vmul.f32 %v1892, 2.0
        %v1925 = vmul.f32 %v1893, 2.0
        %v1926 = vmul.f32 %v1894, 2.0
        %v1927 = vmul.f32 %v1895, 2.0
        %v1928 = vmul.f32 %v1896, 2.0
        %v1929 = vmul.f32 %v1897, 2.0
        %v1930 = vmul.f32 %v1898, 2.0
        %v1931 = vmul.f32 %v1899, 2.0
        %v1932 = vadd.f32 %v1924, 0.0001
        %v1933 = vadd.f32 %v1925, 0.0001
        %v1934 = vadd.f32 %v1926, 0.0001
        %v1935 = vadd.f32 %v1927, 0.0001
        %v1936 = vadd.f32 %v1928, 0.0001
        %v1937 = vadd.f32 %v1929, 0.0001
        %v1938 = vadd.f32 %v1930, 0.0001
        %v1939 = vadd.f32 %v1931, 0.0001
        %v1940 = vmul.f32 %v1916, 2.0
        %v1941 = vmul.f32 %v1917, 2.0
        %v1942 = vmul.f32 %v1918, 2.0
        %v1943 = vmul.f32 %v1919, 2.0
        %v1944 = vmul.f32 %v1920, 2.0
        %v1945 = vmul.f32 %v1921, 2.0
        %v1946 = vmul.f32 %v1922, 2.0
        %v1947 = vmul.f32 %v1923, 2.0
        %v1948 = vadd.f32 %v1940, 0.0009
        %v1949 = vadd.f32 %v1941, 0.0009
        %v1950 = vadd.f32 %v1942, 0.0009
        %v1951 = vadd.f32 %v1943, 0.0009
        %v1952 = vadd.f32 %v1944, 0.0009
        %v1953 = vadd.f32 %v1945, 0.0009
        %v1954 = vadd.f32 %v1946, 0.0009
        %v1955 = vadd.f32 %v1947, 0.0009
        %v1956 = vadd.f32 %v1876, %v1884
        %v1957 = vadd.f32 %v1877, %v1885
        %v1958 = vadd.f32 %v1878, %v1886
        %v1959 = vadd.f32 %v1879, %v1887
        %v1960 = vadd.f32 %v1880, %v1888
        %v1961 = vadd.f32 %v1881, %v1889
        %v1962 = vadd.f32 %v1882, %v1890
        %v1963 = vadd.f32 %v1883, %v1891
        %v1964 = vadd.f32 %v1956, 0.0001
        %v1965 = vadd.f32 %v1957, 0.0001
        %v1966 = vadd.f32 %v1958, 0.0001
        %v1967 = vadd.f32 %v1959, 0.0001
        %v1968 = vadd.f32 %v1960, 0.0001
        %v1969 = vadd.f32 %v1961, 0.0001
        %v1970 = vadd.f32 %v1962, 0.0001
        %v1971 = vadd.f32 %v1963, 0.0001
        %v1972 = vadd.f32 %v1900, %v1908
        %v1973 = vadd.f32 %v1901, %v1909
        %v1974 = vadd.f32 %v1902, %v1910
        %v1975 = vadd.f32 %v1903, %v1911
        %v1976 = vadd.f32 %v1904, %v1912
        %v1977 = vadd.f32 %v1905, %v1913
        %v1978 = vadd.f32 %v1906, %v1914
        %v1979 = vadd.f32 %v1907, %v1915
        %v1980 = vadd.f32 %v1972, 0.0009
        %v1981 = vadd.f32 %v1973, 0.0009
        %v1982 = vadd.f32 %v1974, 0.0009
        %v1983 = vadd.f32 %v1975, 0.0009
        %v1984 = vadd.f32 %v1976, 0.0009
        %v1985 = vadd.f32 %v1977, 0.0009
        %v1986 = vadd.f32 %v1978, 0.0009
        %v1987 = vadd.f32 %v1979, 0.0009
        %v1988 = vmul.f32 %v1932, %v1948
        %v1989 = vmul.f32 %v1933, %v1949
        %v1990 = vmul.f32 %v1934, %v1950
        %v1991 = vmul.f32 %v1935, %v1951
        %v1992 = vmul.f32 %v1936, %v1952
        %v1993 = vmul.f32 %v1937, %v1953
        %v1994 = vmul.f32 %v1938, %v1954
        %v1995 = vmul.f32 %v1939, %v1955
        %v1996 = vmul.f32 %v1964, %v1980
        %v1997 = vmul.f32 %v1965, %v1981
        %v1998 = vmul.f32 %v1966, %v1982
        %v1999 = vmul.f32 %v1967, %v1983
        %v2000 = vmul.f32 %v1968, %v1984
        %v2001 = vmul.f32 %v1969, %v1985
        %v2002 = vmul.f32 %v1970, %v1986
        %v2003 = vmul.f32 %v1971, %v1987
        %v2004 = vrcp.pop %v1996
        %v2005 = vmul.f32 %v1988, %v2004
        %v2006 = vrcp.pop %v1997
        %v2007 = vmul.f32 %v1989, %v2006
        %v2008 = vrcp.pop %v1998
        %v2009 = vmul.f32 %v1990, %v2008
        %v2010 = vrcp.pop %v1999
        %v2011 = vmul.f32 %v1991, %v2010
        %v2012 = vrcp.pop %v2000
        %v2013 = vmul.f32 %v1992, %v2012
        %v2014 = vrcp.pop %v2001
        %v2015 = vmul.f32 %v1993, %v2014
        %v2016 = vrcp.pop %v2002
        %v2017 = vmul.f32 %v1994, %v2016
        %v2018 = vrcp.pop %v2003
        %v2019 = vmul.f32 %v1995, %v2018
        %v2020 = vlaneseq
        %v2021 = vand.u32 %v2020, 127
        %vm2022 = vcmp.lt.s32.totalorder %v2021, 16
        %v2023 = vsel %vm2022, %v2005, 0.0
        %v2024 = vsel %vm2022, %v2007, 0.0
        %v2025 = vsel %vm2022, %v2009, 0.0
        %v2026 = vsel %vm2022, %v2011, 0.0
        %v2027 = vsel %vm2022, %v2013, 0.0
        %v2028 = vsel %vm2022, %v2015, 0.0
        %v2029 = vsel %vm2022, %v2017, 0.0
        %v2030 = vsel %vm2022, %v2019, 0.0
        %v2031 = vadd.f32 %v2023, %v2024
        %v2032 = vadd.f32 %v2031, %v2025
        %v2033 = vadd.f32 %v2032, %v2026
        %v2034 = vadd.f32 %v2033, %v2027
        %v2035 = vadd.f32 %v2034, %v2028
        %v2036 = vadd.f32 %v2035, %v2029
        %v2037 = vadd.f32 %v2036, %v2030
        %2038 = vadd.xlane.f32.xlu0 %v2037
        %v2039 = vpop.xlane.xlu0 %2038
        %v2040 = vrot.slane %v2039, 4
        %v2041 = vadd.f32 %v2039, %v2040
        %v2042 = vrot.slane %v2041, 2
        %v2043 = vadd.f32 %v2041, %v2042
        %v2044 = vrot.slane %v2043, 1
        %v2045 = vadd.f32 %v2043, %v2044
        %s2046 = vtos %v2045
        %v2047 = vrcp.pop 1024.0
        %s2048 = vtos %v2047
        %s2049 = smul.f32 %s2046, %s2048
        %s2050 = ssub.f32 1.0, %s2049
        %s2051 = scalar_lea.smem [#allocation9], %s21
        %2052 = sst [smem:[%s2051]] %s2050
        // Predicated region
        $region45: #{tpu_custom_call.1} parent=31 // pred_check
          %p2053 = pneg %p107
        $region46: #{tpu_custom_call.1} parent=31 // pred_check_branch
          %2055 = sbr.rel (%p2053) target = $region48
        $region47: #{tpu_custom_call.1} parent=31 // pred_region
          %s2057 = ssub.s32 16, 16
          %2058 = vsyncadd [#allocation5], %s2057
          %2061 = dma.smem_to_hbm [#allocation9], 16, %s3, [#allocation5]
        $region48: #{tpu_custom_call.1} parent=31 // pred_fallthru
          _
        // Predicated region
        $region49: #{tpu_custom_call.1} parent=31 // pred_check
          %p2062 = pneg %p107
        $region50: #{tpu_custom_call.1} parent=31 // pred_check_branch
          %2064 = sbr.rel (%p2062) target = $region52
        $region51: #{tpu_custom_call.1} parent=31 // pred_region
          %2065 = dma.done [#allocation5], 16
        $region52: #{tpu_custom_call.1} parent=31 // pred_fallthru
          _
        %2066 = sfence
      $region32: #{tpu_custom_call.1} parent=5 // pred_fallthru
        _
      %p2067 = scmp.le.s32.totalorder 2, %s16
      // Predicated region
      $region53: #{tpu_custom_call.1} parent=5 // pred_check
        %p2068 = pneg %p2067
      $region54: #{tpu_custom_call.1} parent=5 // pred_check_branch
        %2070 = sbr.rel (%p2068) target = $region56
      $region55: #{tpu_custom_call.1} parent=5 // pred_region
        %s2071 = ssub.s32 %s16, 2
      $region56: #{tpu_custom_call.1} parent=5 // pred_fallthru
        _
    $region6: #{tpu_custom_call.1} parent=1 // loop_footer
      %s20 = sadd.s32 1, %s16
    $region7: #{tpu_custom_call.1} parent=1 // loop_footer_branch
      %15 = sbr.rel target = $region3
    $region8: #{tpu_custom_call.1} parent=1 // loop_exit
      _
    %2072 = vsyncpa [#allocation4], 1
    %s2073 = scalar_lea.sflag [#allocation4], 1
    %2074 = vsyncpa %s2073, 1
    %2075 = vsyncpa [#allocation7], 1
    %s2076 = scalar_lea.sflag [#allocation7], 1
    %2077 = vsyncpa %s2076, 1
    %2078 = vsyncpa [#allocation5], 1
    %s2079 = scalar_lea.sflag [#allocation5], 1
    %2080 = vsyncpa %s2079, 1

</llo_original>
